<compile_context>
chip_gen: v5e
topology: v5e:2x2
jax: 0.10.0
libtpu: 0.0.40
codegen_flags: <defaults>
</compile_context>

<pallas_src>
import functools
import math

import jax
import jax.numpy as jnp
import numpy as np
from jax import lax
from jax.experimental import pallas as pl
from jax.experimental.pallas import tpu as pltpu

MAX_F32 = float(np.finfo(np.float32).max)


def _layernorm(v, eps, w=None, b=None):
    mu = jnp.mean(v, axis=-1, keepdims=True)
    var = jnp.mean((v - mu) ** 2, axis=-1, keepdims=True)
    y = (v - mu) * lax.rsqrt(var + eps)
    if w is not None:
        y = y * w + b
    return y


def _gelu_tanh(v):
    c0 = 0.7978845608028654  # sqrt(2/pi)
    return 0.5 * v * (1.0 + jnp.tanh(c0 * (v + 0.044715 * v * v * v)))


# ----------------------------------------------------------------------------
# Kernel: grid = (batch, mlp_hidden_tile). Attention runs once per batch row
# (m == 0) and stashes x1 / norm2(x1) in VMEM scratch; each m-step accumulates
# one (C, tile_m) x (tile_m, C) slice of the MLP into a f32 accumulator.
# ----------------------------------------------------------------------------
def cross_attn_block_kernel(
    x_ref, ctx_ref, mq_ref,
    ncw_ref, ncb_ref,
    wq_ref, bq_ref, wkv_ref, bkv_ref,
    wo_ref, bo_ref,
    w1_ref, b1_ref, w2_ref, b2_ref,
    out_ref,
    x1_sc, x2n_sc, acc_sc,
    *, num_heads: int,
):
    m_idx = pl.program_id(1)
    n_m = pl.num_programs(1)

    # ---------------- phase 1: attention + residual + norm2 (m == 0 only) ----
    @pl.when(m_idx == 0)
    def _attention_phase():
        x = x_ref[0].astype(jnp.float32)        # (N1, C)
        ctx = ctx_ref[0].astype(jnp.float32)    # (N2, C)
        mq = mq_ref[0]                          # (N1, 1) f32: 1.0 keep / 0.0 masked

        N1, C = x.shape
        H = num_heads
        D = C // H
        scale = 1.0 / math.sqrt(D)

        # LayerNorm stats in f32, bf16 operands for the MXU.
        xn = _layernorm(x, 1e-6).astype(jnp.bfloat16)
        cn = _layernorm(ctx, 1e-5, ncw_ref[...], ncb_ref[...]).astype(jnp.bfloat16)

        q = jnp.dot(xn, wq_ref[...], preferred_element_type=jnp.float32) + bq_ref[...]
        # Fused K/V projection: one (N2, 2C) matmul, k/v via static C-aligned lane slices.
        kv = jnp.dot(cn, wkv_ref[...], preferred_element_type=jnp.float32) + bkv_ref[...]

        qb = q.astype(jnp.bfloat16)
        kb = kv[:, :C].astype(jnp.bfloat16)
        vb = kv[:, C:].astype(jnp.bfloat16)
        wo = wo_ref[...]                        # (C, C) bf16

        # Query-row mask -> additive bias column (same -finfo(f32).max constant the
        # PyTorch forward uses); built in-kernel, broadcast over keys on the logits.
        neg = jnp.where(mq > 0.0, jnp.float32(0.0), jnp.float32(-MAX_F32))   # (N1, 1)

        def head_softmax_pv(h):
            sl = slice(h * D, (h + 1) * D)
            sim = jnp.einsum('qd,kd->qk', qb[:, sl], kb[:, sl],
                             preferred_element_type=jnp.float32) * scale + neg
            mrow = jnp.max(sim, axis=-1, keepdims=True)
            p = jnp.exp(sim - mrow)
            ssum = jnp.sum(p, axis=-1, keepdims=True)
            oh = jnp.dot(p.astype(jnp.bfloat16), vb[:, sl],
                         preferred_element_type=jnp.float32)      # (N1, D)
            # deferred softmax normalization on the (N1, D) output, EUP reciprocal
            return oh * pl.reciprocal(ssum, approx=True)

        if D >= 128:
            # Head dim already fills the MXU contraction: fuse output projection per head.
            attn_out = bo_ref[...]
            for h in range(H):
                oh = head_softmax_pv(h)
                attn_out = attn_out + jnp.dot(
                    oh.astype(jnp.bfloat16), wo[h * D:(h + 1) * D, :],
                    preferred_element_type=jnp.float32)
        else:
            # D < 128 (toy D=32): concatenate heads along lanes (static, contiguous slices)
            # and do ONE dense C-contraction projection.
            o_parts = [head_softmax_pv(h).astype(jnp.bfloat16) for h in range(H)]
            o = o_parts[0] if H == 1 else jnp.concatenate(o_parts, axis=-1)   # (N1, C)
            attn_out = jnp.dot(o, wo, preferred_element_type=jnp.float32) + bo_ref[...]

        x1 = x + attn_out
        x1_sc[...] = x1
        x2n_sc[...] = _layernorm(x1, 1e-6).astype(jnp.bfloat16)
        acc_sc[...] = jnp.zeros_like(acc_sc)

    # ---------------- phase 2: MLP hidden-dim tile (every m step) ------------
    x2n = x2n_sc[...]                                              # (N1, C) bf16
    h1 = jnp.dot(x2n, w1_ref[...], preferred_element_type=jnp.float32) + b1_ref[...]
    g = _gelu_tanh(h1)
    acc_sc[...] += jnp.dot(g.astype(jnp.bfloat16), w2_ref[...],
                           preferred_element_type=jnp.float32)

    # ---------------- finalize ------------------------------------------------
    @pl.when(m_idx == n_m - 1)
    def _finalize():
        out_ref[0] = (x1_sc[...] + acc_sc[...] + b2_ref[...]).astype(out_ref.dtype)


# ----------------------------------------------------------------------------
# One-time parameter prep: bf16 casts + wk|wv fusion hoisted out of the hot path.
# ----------------------------------------------------------------------------
def prepare_params(params):
    bf = lambda a: a.astype(jnp.bfloat16)
    return {
        'nc_w': params['nc_w'], 'nc_b': params['nc_b'],
        'wq': bf(params['wq']), 'bq': params['bq'],
        'wkv': bf(jnp.concatenate([params['wk'], params['wv']], axis=1)),   # (C, 2C)
        'bkv': jnp.concatenate([params['bk'], params['bv']], axis=1),        # (1, 2C)
        'wo': bf(params['wo']), 'bo': params['bo'],
        'w1': bf(params['w1']), 'b1': params['b1'],
        'w2': bf(params['w2']), 'b2': params['b2'],
    }


def _vmem_limit_bytes():
    # Per-generation VMEM budget: 75% of physical, capped at 100 MiB (v5e/v6e have
    # 128 MiB physical; v7x only 64 MiB, so its budget lands near 48 MiB).
    try:
        cap = int(pltpu.get_tpu_info().vmem_capacity_bytes)
    except Exception:
        cap = 64 * 1024 * 1024
    return int(min(0.75 * cap, 100 * 1024 * 1024))


# ----------------------------------------------------------------------------
# Wrapper.
# ----------------------------------------------------------------------------
def cross_attn_block(x, context, mask, prepped, num_heads, *, tile_m=256):
    B, N1, C = x.shape
    N2 = context.shape[1]
    M = prepped['w1'].shape[1]
    tile_m = min(tile_m, M)
    assert M % tile_m == 0, "mlp hidden dim must be a multiple of tile_m"
    GM = M // tile_m

    # Tiny (B, N1, 1) query-mask column instead of a (B, H, N1, N2) f32 bias tensor.
    maskq = mask.astype(jnp.float32)[:, :, None]

    batch3 = lambda b, m: (b, 0, 0)
    const2 = lambda b, m: (0, 0)

    in_arrays = [
        x, context, maskq,
        prepped['nc_w'], prepped['nc_b'],
        prepped['wq'], prepped['bq'],
        prepped['wkv'], prepped['bkv'],
        prepped['wo'], prepped['bo'],
        prepped['w1'], prepped['b1'], prepped['w2'], prepped['b2'],
    ]
    in_specs = [
        pl.BlockSpec((1, N1, C), batch3),
        pl.BlockSpec((1, N2, C), batch3),
        pl.BlockSpec((1, N1, 1), batch3),
        pl.BlockSpec((1, C), const2), pl.BlockSpec((1, C), const2),
        pl.BlockSpec((C, C), const2), pl.BlockSpec((1, C), const2),
        pl.BlockSpec((C, 2 * C), const2), pl.BlockSpec((1, 2 * C), const2),
        pl.BlockSpec((C, C), const2), pl.BlockSpec((1, C), const2),
        pl.BlockSpec((C, tile_m), lambda b, m: (0, m)),    # w1 tile
        pl.BlockSpec((1, tile_m), lambda b, m: (0, m)),    # b1 tile
        pl.BlockSpec((tile_m, C), lambda b, m: (m, 0)),    # w2 tile
        pl.BlockSpec((1, C), const2),                      # b2
    ]

    kernel = functools.partial(cross_attn_block_kernel, num_heads=num_heads)

    # Advisory cost hint for XLA scheduling around the custom call.
    flops = B * (2 * N1 * C * C          # q projection
                 + 2 * N2 * C * (2 * C)  # fused kv projection
                 + 4 * N1 * N2 * C       # scores + PV
                 + 2 * N1 * C * C        # output projection
                 + 4 * N1 * C * M)       # MLP
    transcendentals = B * (num_heads * N1 * N2 + N1 * M)
    bytes_accessed = (
        2 * B * N1 * C * 4 + B * N2 * C * 4 + B * N1 * 4         # x, out, ctx, mask
        + (2 * C * C + C * 2 * C + 2 * C * M) * 2                # bf16 weights
        + (8 * C + M) * 4)                                       # biases / LN params

    return pl.pallas_call(
        kernel,
        out_shape=jax.ShapeDtypeStruct((B, N1, C), x.dtype),
        grid_spec=pltpu.PrefetchScalarGridSpec(
            num_scalar_prefetch=0,
            grid=(B, GM),
            in_specs=in_specs,
            out_specs=pl.BlockSpec((1, N1, C), lambda b, m: (b, 0, 0)),
            scratch_shapes=[
                pltpu.VMEM((N1, C), jnp.float32),    # x1   (attention residual)
                pltpu.VMEM((N1, C), jnp.bfloat16),   # norm2(x1), MLP input
                pltpu.VMEM((N1, C), jnp.float32),    # MLP output accumulator
            ],
        ),
        compiler_params=pltpu.CompilerParams(
            dimension_semantics=("parallel", "arbitrary"),
            vmem_limit_bytes=_vmem_limit_bytes(),
        ),
        cost_estimate=pl.CostEstimate(
            flops=flops,
            transcendentals=transcendentals,
            bytes_accessed=bytes_accessed),
    )(*in_arrays)


# ----------------------------------------------------------------------------
# Pure-JAX reference mirroring the module semantics and the kernel's precision
# recipe (bf16 matmul operands, f32 accumulation / statistics).
# ----------------------------------------------------------------------------
def reference(x, context, mask, params, num_heads):
    B, N1, C = x.shape
    N2 = context.shape[1]
    H = num_heads
    D = C // H
    bf, f32 = jnp.bfloat16, jnp.float32

    def ln(v, eps, w=None, b=None):
        mu = jnp.mean(v, axis=-1, keepdims=True)
        var = jnp.mean((v - mu) ** 2, axis=-1, keepdims=True)
        y = (v - mu) / jnp.sqrt(var + eps)
        return y if w is None else y * w + b

    wq, wk, wv, wo = (params[k].astype(bf) for k in ('wq', 'wk', 'wv', 'wo'))
    w1, w2 = params['w1'].astype(bf), params['w2'].astype(bf)

    xn = ln(x, 1e-6).astype(bf)
    cn = ln(context, 1e-5, params['nc_w'], params['nc_b']).astype(bf)
    q = jnp.dot(xn, wq, preferred_element_type=f32) + params['bq']
    k = jnp.dot(cn, wk, preferred_element_type=f32) + params['bk']
    v = jnp.dot(cn, wv, preferred_element_type=f32) + params['bv']
    qh = q.astype(bf).reshape(B, N1, H, D).transpose(0, 2, 1, 3)
    kh = k.astype(bf).reshape(B, N2, H, D).transpose(0, 2, 1, 3)
    vh = v.astype(bf).reshape(B, N2, H, D).transpose(0, 2, 1, 3)

    bias = jnp.where(mask[:, None, :, None], 0.0, -MAX_F32).astype(f32)   # (B,1,N1,1)
    sim = jnp.einsum('bhqd,bhkd->bhqk', qh, kh,
                     preferred_element_type=f32) * (1.0 / math.sqrt(D)) + bias
    mrow = jnp.max(sim, axis=-1, keepdims=True)
    p = jnp.exp(sim - mrow)
    ssum = jnp.sum(p, axis=-1, keepdims=True)
    o = jnp.einsum('bhqk,bhkd->bhqd', p.astype(bf), vh,
                   preferred_element_type=f32) / ssum
    o = o.transpose(0, 2, 1, 3).reshape(B, N1, C)
    x1 = x + (jnp.dot(o.astype(bf), wo, preferred_element_type=f32) + params['bo'])

    x2n = ln(x1, 1e-6).astype(bf)
    h1 = jnp.dot(x2n, w1, preferred_element_type=f32) + params['b1']
    c0 = 0.7978845608028654
    g = 0.5 * h1 * (1.0 + jnp.tanh(c0 * (h1 + 0.044715 * h1 ** 3)))
    return x1 + (jnp.dot(g.astype(bf), w2, preferred_element_type=f32) + params['b2'])


# ----------------------------------------------------------------------------
if __name__ == "__main__":
    B, N1, N2 = 2, 16, 8          # batch, query seq, context seq
    C, H = 64, 2                  # hidden_size, num_heads (context_dim == hidden_size)
    mlp_ratio = 4.0
    M = int(C * mlp_ratio)        # 256 -> one 256-wide MLP hidden tile

    key = jax.random.PRNGKey(0)
    ks = jax.random.split(key, 20)

    x = jax.random.normal(ks[0], (B, N1, C), jnp.float32)
    context = jax.random.normal(ks[1], (B, N2, C), jnp.float32)
    # query mask (mask.shape[1] == x.shape[1] branch of the PyTorch forward)
    mask = jax.random.uniform(ks[2], (B, N1)) > 0.25

    def w(k, shape, s=0.05):
        return jax.random.normal(k, shape, jnp.float32) * s

    params = {
        # norm_context (affine LayerNorm, eps=1e-5)
        'nc_w': 1.0 + w(ks[3], (1, C)),
        'nc_b': w(ks[4], (1, C)),
        # Attention: to_q, to_kv (split into k/v halves), to_out (qkv_bias=True)
        'wq': w(ks[5], (C, C)), 'bq': w(ks[6], (1, C)),
        'wk': w(ks[7], (C, C)), 'bk': w(ks[8], (1, C)),
        'wv': w(ks[9], (C, C)), 'bv': w(ks[10], (1, C)),
        'wo': w(ks[11], (C, C)), 'bo': w(ks[12], (1, C)),
        # Mlp: fc1 -> GELU(tanh) -> fc2 (drop=0)
        'w1': w(ks[13], (C, M)), 'b1': w(ks[14], (1, M)),
        'w2': w(ks[15], (M, C)), 'b2': w(ks[16], (1, C)),
    }

    # One-time bf16 cast + K/V fusion (kept out of the per-call hot path).
    prepped = jax.tree_util.tree_map(jax.block_until_ready, prepare_params(params))

    out = jax.block_until_ready(cross_attn_block(x, context, mask, prepped, num_heads=H))
    ref = jax.block_until_ready(reference(x, context, mask, params, num_heads=H))
    np.testing.assert_allclose(np.asarray(out), np.asarray(ref), rtol=5e-3, atol=5e-3)

    print("KERNEL_OK")
</pallas_src>

<mosaic_0001>
module attributes {stable_mosaic.version = 11 : i64} {
  func.func @cross_attn_block_kernel(%arg0: i32, %arg1: i32, %arg2: memref<1x16x64xf32, #tpu.memory_space<vmem>>, %arg3: memref<1x8x64xf32, #tpu.memory_space<vmem>>, %arg4: memref<1x16x1xf32, #tpu.memory_space<vmem>>, %arg5: memref<1x64xf32, #tpu.memory_space<vmem>>, %arg6: memref<1x64xf32, #tpu.memory_space<vmem>>, %arg7: memref<64x64xbf16, #tpu.memory_space<vmem>>, %arg8: memref<1x64xf32, #tpu.memory_space<vmem>>, %arg9: memref<64x128xbf16, #tpu.memory_space<vmem>>, %arg10: memref<1x128xf32, #tpu.memory_space<vmem>>, %arg11: memref<64x64xbf16, #tpu.memory_space<vmem>>, %arg12: memref<1x64xf32, #tpu.memory_space<vmem>>, %arg13: memref<64x256xbf16, #tpu.memory_space<vmem>>, %arg14: memref<1x256xf32, #tpu.memory_space<vmem>>, %arg15: memref<256x64xbf16, #tpu.memory_space<vmem>>, %arg16: memref<1x64xf32, #tpu.memory_space<vmem>>, %arg17: memref<1x16x64xf32, #tpu.memory_space<vmem>>, %arg18: memref<16x64xf32, #tpu.memory_space<vmem>>, %arg19: memref<16x64xbf16, #tpu.memory_space<vmem>>, %arg20: memref<16x64xf32, #tpu.memory_space<vmem>>) attributes {dimension_semantics = [#tpu.dimension_semantics<parallel>, #tpu.dimension_semantics<arbitrary>], iteration_bounds = array<i64: 2, 1>, scalar_prefetch = 0 : i64, scratch_operands = 3 : i64, tpu.core_type = #tpu.core_type<tc>, window_params = [{transform_indices = @transform_0, window_bounds = array<i64: 1, 16, 64>}, {transform_indices = @transform_1, window_bounds = array<i64: 1, 8, 64>}, {transform_indices = @transform_2, window_bounds = array<i64: 1, 16, 1>}, {pipeline_mode = #tpu.pipeline_mode<synchronous>, transform_indices = @transform_3, window_bounds = array<i64: 1, 64>}, {pipeline_mode = #tpu.pipeline_mode<synchronous>, transform_indices = @transform_4, window_bounds = array<i64: 1, 64>}, {pipeline_mode = #tpu.pipeline_mode<synchronous>, transform_indices = @transform_5, window_bounds = array<i64: 64, 64>}, {pipeline_mode = #tpu.pipeline_mode<synchronous>, transform_indices = @transform_6, window_bounds = array<i64: 1, 64>}, {pipeline_mode = #tpu.pipeline_mode<synchronous>, transform_indices = @transform_7, window_bounds = array<i64: 64, 128>}, {pipeline_mode = #tpu.pipeline_mode<synchronous>, transform_indices = @transform_8, window_bounds = array<i64: 1, 128>}, {pipeline_mode = #tpu.pipeline_mode<synchronous>, transform_indices = @transform_9, window_bounds = array<i64: 64, 64>}, {pipeline_mode = #tpu.pipeline_mode<synchronous>, transform_indices = @transform_10, window_bounds = array<i64: 1, 64>}, {transform_indices = @transform_11, window_bounds = array<i64: 64, 256>}, {transform_indices = @transform_12, window_bounds = array<i64: 1, 256>}, {transform_indices = @transform_13, window_bounds = array<i64: 256, 64>}, {pipeline_mode = #tpu.pipeline_mode<synchronous>, transform_indices = @transform_14, window_bounds = array<i64: 1, 64>}, {transform_indices = @transform_15, window_bounds = array<i64: 1, 16, 64>}]} {
    %c0_i32 = arith.constant 0 : i32
    %0 = arith.cmpi eq, %arg1, %c0_i32 : i32
    %1 = arith.extui %0 : i1 to i32
    %c0_i32_0 = arith.constant 0 : i32
    %2 = arith.cmpi ne, %1, %c0_i32_0 : i32
    scf.if %2 {
      %c0_19 = arith.constant 0 : index
      %c0_20 = arith.constant 0 : index
      %c0_21 = arith.constant 0 : index
      %31 = vector.load %arg2[%c0_19, %c0_20, %c0_21] : memref<1x16x64xf32, #tpu.memory_space<vmem>>, vector<1x16x64xf32>
      %32 = vector.shape_cast %31 : vector<1x16x64xf32> to vector<16x64xf32>
      %c0_22 = arith.constant 0 : index
      %c0_23 = arith.constant 0 : index
      %c0_24 = arith.constant 0 : index
      %33 = vector.load %arg3[%c0_22, %c0_23, %c0_24] : memref<1x8x64xf32, #tpu.memory_space<vmem>>, vector<1x8x64xf32>
      %34 = vector.shape_cast %33 : vector<1x8x64xf32> to vector<8x64xf32>
      %c0_25 = arith.constant 0 : index
      %c0_26 = arith.constant 0 : index
      %c0_27 = arith.constant 0 : index
      %35 = vector.load %arg4[%c0_25, %c0_26, %c0_27] : memref<1x16x1xf32, #tpu.memory_space<vmem>>, vector<1x16x1xf32>
      %36 = vector.shape_cast %35 : vector<1x16x1xf32> to vector<16x1xf32>
      %cst_28 = arith.constant dense<0.000000e+00> : vector<16xf32>
      %37 = vector.multi_reduction <add>, %32, %cst_28 [1] : vector<16x64xf32> to vector<16xf32>
      %38 = vector.shape_cast %37 : vector<16xf32> to vector<16x1xf32>
      %cst_29 = arith.constant 6.400000e+01 : f32
      %39 = vector.broadcast %cst_29 : f32 to vector<16x1xf32>
      %40 = arith.divf %38, %39 : vector<16x1xf32>
      %41 = vector.broadcast %40 : vector<16x1xf32> to vector<16x64xf32>
      %42 = arith.subf %32, %41 : vector<16x64xf32>
      %43 = arith.mulf %42, %42 : vector<16x64xf32>
      %cst_30 = arith.constant dense<0.000000e+00> : vector<16xf32>
      %44 = vector.multi_reduction <add>, %43, %cst_30 [1] : vector<16x64xf32> to vector<16xf32>
      %45 = vector.shape_cast %44 : vector<16xf32> to vector<16x1xf32>
      %cst_31 = arith.constant 6.400000e+01 : f32
      %46 = vector.broadcast %cst_31 : f32 to vector<16x1xf32>
      %47 = arith.divf %45, %46 : vector<16x1xf32>
      %48 = vector.broadcast %40 : vector<16x1xf32> to vector<16x64xf32>
      %49 = arith.subf %32, %48 : vector<16x64xf32>
      %cst_32 = arith.constant 9.99999997E-7 : f32
      %50 = vector.broadcast %cst_32 : f32 to vector<16x1xf32>
      %51 = arith.addf %47, %50 : vector<16x1xf32>
      %52 = math.rsqrt %51 : vector<16x1xf32>
      %53 = vector.broadcast %52 : vector<16x1xf32> to vector<16x64xf32>
      %54 = arith.mulf %49, %53 : vector<16x64xf32>
      %55 = arith.truncf %54 : vector<16x64xf32> to vector<16x64xbf16>
      %c0_33 = arith.constant 0 : index
      %c0_34 = arith.constant 0 : index
      %56 = vector.load %arg5[%c0_33, %c0_34] : memref<1x64xf32, #tpu.memory_space<vmem>>, vector<1x64xf32>
      %c0_35 = arith.constant 0 : index
      %c0_36 = arith.constant 0 : index
      %57 = vector.load %arg6[%c0_35, %c0_36] : memref<1x64xf32, #tpu.memory_space<vmem>>, vector<1x64xf32>
      %cst_37 = arith.constant dense<0.000000e+00> : vector<8xf32>
      %58 = vector.multi_reduction <add>, %34, %cst_37 [1] : vector<8x64xf32> to vector<8xf32>
      %59 = vector.shape_cast %58 : vector<8xf32> to vector<8x1xf32>
      %cst_38 = arith.constant 6.400000e+01 : f32
      %60 = vector.broadcast %cst_38 : f32 to vector<8x1xf32>
      %61 = arith.divf %59, %60 : vector<8x1xf32>
      %62 = vector.broadcast %61 : vector<8x1xf32> to vector<8x64xf32>
      %63 = arith.subf %34, %62 : vector<8x64xf32>
      %64 = arith.mulf %63, %63 : vector<8x64xf32>
      %cst_39 = arith.constant dense<0.000000e+00> : vector<8xf32>
      %65 = vector.multi_reduction <add>, %64, %cst_39 [1] : vector<8x64xf32> to vector<8xf32>
      %66 = vector.shape_cast %65 : vector<8xf32> to vector<8x1xf32>
      %cst_40 = arith.constant 6.400000e+01 : f32
      %67 = vector.broadcast %cst_40 : f32 to vector<8x1xf32>
      %68 = arith.divf %66, %67 : vector<8x1xf32>
      %69 = vector.broadcast %61 : vector<8x1xf32> to vector<8x64xf32>
      %70 = arith.subf %34, %69 : vector<8x64xf32>
      %cst_41 = arith.constant 9.99999974E-6 : f32
      %71 = vector.broadcast %cst_41 : f32 to vector<8x1xf32>
      %72 = arith.addf %68, %71 : vector<8x1xf32>
      %73 = math.rsqrt %72 : vector<8x1xf32>
      %74 = vector.broadcast %73 : vector<8x1xf32> to vector<8x64xf32>
      %75 = arith.mulf %70, %74 : vector<8x64xf32>
      %76 = vector.broadcast %56 : vector<1x64xf32> to vector<8x64xf32>
      %77 = arith.mulf %75, %76 : vector<8x64xf32>
      %78 = vector.broadcast %57 : vector<1x64xf32> to vector<8x64xf32>
      %79 = arith.addf %77, %78 : vector<8x64xf32>
      %80 = arith.truncf %79 : vector<8x64xf32> to vector<8x64xbf16>
      %c0_42 = arith.constant 0 : index
      %c0_43 = arith.constant 0 : index
      %81 = vector.load %arg7[%c0_42, %c0_43] : memref<64x64xbf16, #tpu.memory_space<vmem>>, vector<64x64xbf16>
      %cst_44 = arith.constant dense<0.000000e+00> : vector<16x64xf32>
      %82 = tpu.matmul %55, %81, %cst_44 {dimension_numbers = #tpu.dot_dimension_numbers<[1], [0], [0], [1], [0, 0, 1, 1], [], []>} : vector<16x64xbf16>, vector<64x64xbf16>, vector<16x64xf32> -> vector<16x64xf32>
      %c0_45 = arith.constant 0 : index
      %c0_46 = arith.constant 0 : index
      %83 = vector.load %arg8[%c0_45, %c0_46] : memref<1x64xf32, #tpu.memory_space<vmem>>, vector<1x64xf32>
      %84 = vector.broadcast %83 : vector<1x64xf32> to vector<16x64xf32>
      %85 = arith.addf %82, %84 : vector<16x64xf32>
      %c0_47 = arith.constant 0 : index
      %c0_48 = arith.constant 0 : index
      %86 = vector.load %arg9[%c0_47, %c0_48] : memref<64x128xbf16, #tpu.memory_space<vmem>>, vector<64x128xbf16>
      %cst_49 = arith.constant dense<0.000000e+00> : vector<8x128xf32>
      %87 = tpu.matmul %80, %86, %cst_49 {dimension_numbers = #tpu.dot_dimension_numbers<[1], [0], [0], [1], [0, 0, 1, 1], [], []>} : vector<8x64xbf16>, vector<64x128xbf16>, vector<8x128xf32> -> vector<8x128xf32>
      %c0_50 = arith.constant 0 : index
      %c0_51 = arith.constant 0 : index
      %88 = vector.load %arg10[%c0_50, %c0_51] : memref<1x128xf32, #tpu.memory_space<vmem>>, vector<1x128xf32>
      %89 = vector.broadcast %88 : vector<1x128xf32> to vector<8x128xf32>
      %90 = arith.addf %87, %89 : vector<8x128xf32>
      %91 = arith.truncf %85 : vector<16x64xf32> to vector<16x64xbf16>
      %92 = vector.extract_strided_slice %90 {offsets = [0, 0], sizes = [8, 64], strides = [1, 1]} : vector<8x128xf32> to vector<8x64xf32>
      %93 = arith.truncf %92 : vector<8x64xf32> to vector<8x64xbf16>
      %94 = vector.extract_strided_slice %90 {offsets = [0, 64], sizes = [8, 64], strides = [1, 1]} : vector<8x128xf32> to vector<8x64xf32>
      %95 = arith.truncf %94 : vector<8x64xf32> to vector<8x64xbf16>
      %c0_52 = arith.constant 0 : index
      %c0_53 = arith.constant 0 : index
      %96 = vector.load %arg11[%c0_52, %c0_53] : memref<64x64xbf16, #tpu.memory_space<vmem>>, vector<64x64xbf16>
      %cst_54 = arith.constant 0.000000e+00 : f32
      %97 = vector.broadcast %cst_54 : f32 to vector<16x1xf32>
      %98 = arith.cmpf ogt, %36, %97 : vector<16x1xf32>
      %cst_55 = arith.constant 0.000000e+00 : f32
      %cst_56 = arith.constant -3.40282347E+38 : f32
      %99 = vector.broadcast %cst_55 : f32 to vector<16x1xf32>
      %100 = vector.broadcast %cst_56 : f32 to vector<16x1xf32>
      %101 = arith.select %98, %99, %100 : vector<16x1xi1>, vector<16x1xf32>
      %102 = vector.extract_strided_slice %91 {offsets = [0, 0], sizes = [16, 32], strides = [1, 1]} : vector<16x64xbf16> to vector<16x32xbf16>
      %103 = vector.extract_strided_slice %93 {offsets = [0, 0], sizes = [8, 32], strides = [1, 1]} : vector<8x64xbf16> to vector<8x32xbf16>
      "tpu.trace_start"() <{level = 10 : i32, message = "qd,kd->qk"}> : () -> ()
      %cst_57 = arith.constant dense<0.000000e+00> : vector<16x8xf32>
      %104 = tpu.matmul %102, %103, %cst_57 {dimension_numbers = #tpu.dot_dimension_numbers<[1], [1], [0], [0], [0, 0, 1, 0], [], []>} : vector<16x32xbf16>, vector<8x32xbf16>, vector<16x8xf32> -> vector<16x8xf32>
      "tpu.trace_stop"() : () -> ()
      %cst_58 = arith.constant 0.176776692 : f32
      %105 = vector.broadcast %cst_58 : f32 to vector<16x8xf32>
      %106 = arith.mulf %104, %105 : vector<16x8xf32>
      %107 = vector.broadcast %101 : vector<16x1xf32> to vector<16x8xf32>
      %108 = arith.addf %106, %107 : vector<16x8xf32>
      %cst_59 = arith.constant dense<0xFF800000> : vector<16xf32>
      %109 = vector.multi_reduction <maximumf>, %108, %cst_59 [1] : vector<16x8xf32> to vector<16xf32>
      %110 = vector.shape_cast %109 : vector<16xf32> to vector<16x1xf32>
      %111 = vector.broadcast %110 : vector<16x1xf32> to vector<16x8xf32>
      %112 = arith.subf %108, %111 : vector<16x8xf32>
      %113 = math.exp %112 : vector<16x8xf32>
      %cst_60 = arith.constant dense<0.000000e+00> : vector<16xf32>
      %114 = vector.multi_reduction <add>, %113, %cst_60 [1] : vector<16x8xf32> to vector<16xf32>
      %115 = vector.shape_cast %114 : vector<16xf32> to vector<16x1xf32>
      %116 = arith.truncf %113 : vector<16x8xf32> to vector<16x8xbf16>
      %117 = vector.extract_strided_slice %95 {offsets = [0, 0], sizes = [8, 32], strides = [1, 1]} : vector<8x64xbf16> to vector<8x32xbf16>
      %cst_61 = arith.constant dense<0.000000e+00> : vector<16x32xf32>
      %118 = tpu.matmul %116, %117, %cst_61 {dimension_numbers = #tpu.dot_dimension_numbers<[1], [0], [0], [1], [0, 0, 1, 1], [], []>} : vector<16x8xbf16>, vector<8x32xbf16>, vector<16x32xf32> -> vector<16x32xf32>
      %119 = tpu.reciprocal %115 {approx = true} : vector<16x1xf32> -> vector<16x1xf32>
      %120 = vector.broadcast %119 : vector<16x1xf32> to vector<16x32xf32>
      %121 = arith.mulf %118, %120 : vector<16x32xf32>
      %122 = arith.truncf %121 : vector<16x32xf32> to vector<16x32xbf16>
      %123 = vector.extract_strided_slice %91 {offsets = [0, 32], sizes = [16, 32], strides = [1, 1]} : vector<16x64xbf16> to vector<16x32xbf16>
      %124 = vector.extract_strided_slice %93 {offsets = [0, 32], sizes = [8, 32], strides = [1, 1]} : vector<8x64xbf16> to vector<8x32xbf16>
      "tpu.trace_start"() <{level = 10 : i32, message = "qd,kd->qk"}> : () -> ()
      %cst_62 = arith.constant dense<0.000000e+00> : vector<16x8xf32>
      %125 = tpu.matmul %123, %124, %cst_62 {dimension_numbers = #tpu.dot_dimension_numbers<[1], [1], [0], [0], [0, 0, 1, 0], [], []>} : vector<16x32xbf16>, vector<8x32xbf16>, vector<16x8xf32> -> vector<16x8xf32>
      "tpu.trace_stop"() : () -> ()
      %cst_63 = arith.constant 0.176776692 : f32
      %126 = vector.broadcast %cst_63 : f32 to vector<16x8xf32>
      %127 = arith.mulf %125, %126 : vector<16x8xf32>
      %128 = vector.broadcast %101 : vector<16x1xf32> to vector<16x8xf32>
      %129 = arith.addf %127, %128 : vector<16x8xf32>
      %cst_64 = arith.constant dense<0xFF800000> : vector<16xf32>
      %130 = vector.multi_reduction <maximumf>, %129, %cst_64 [1] : vector<16x8xf32> to vector<16xf32>
      %131 = vector.shape_cast %130 : vector<16xf32> to vector<16x1xf32>
      %132 = vector.broadcast %131 : vector<16x1xf32> to vector<16x8xf32>
      %133 = arith.subf %129, %132 : vector<16x8xf32>
      %134 = math.exp %133 : vector<16x8xf32>
      %cst_65 = arith.constant dense<0.000000e+00> : vector<16xf32>
      %135 = vector.multi_reduction <add>, %134, %cst_65 [1] : vector<16x8xf32> to vector<16xf32>
      %136 = vector.shape_cast %135 : vector<16xf32> to vector<16x1xf32>
      %137 = arith.truncf %134 : vector<16x8xf32> to vector<16x8xbf16>
      %138 = vector.extract_strided_slice %95 {offsets = [0, 32], sizes = [8, 32], strides = [1, 1]} : vector<8x64xbf16> to vector<8x32xbf16>
      %cst_66 = arith.constant dense<0.000000e+00> : vector<16x32xf32>
      %139 = tpu.matmul %137, %138, %cst_66 {dimension_numbers = #tpu.dot_dimension_numbers<[1], [0], [0], [1], [0, 0, 1, 1], [], []>} : vector<16x8xbf16>, vector<8x32xbf16>, vector<16x32xf32> -> vector<16x32xf32>
      %140 = tpu.reciprocal %136 {approx = true} : vector<16x1xf32> -> vector<16x1xf32>
      %141 = vector.broadcast %140 : vector<16x1xf32> to vector<16x32xf32>
      %142 = arith.mulf %139, %141 : vector<16x32xf32>
      %143 = arith.truncf %142 : vector<16x32xf32> to vector<16x32xbf16>
      %144 = tpu.concatenate %122, %143 in 1 : vector<16x32xbf16>, vector<16x32xbf16> -> vector<16x64xbf16>
      %cst_67 = arith.constant dense<0.000000e+00> : vector<16x64xf32>
      %145 = tpu.matmul %144, %96, %cst_67 {dimension_numbers = #tpu.dot_dimension_numbers<[1], [0], [0], [1], [0, 0, 1, 1], [], []>} : vector<16x64xbf16>, vector<64x64xbf16>, vector<16x64xf32> -> vector<16x64xf32>
      %c0_68 = arith.constant 0 : index
      %c0_69 = arith.constant 0 : index
      %146 = vector.load %arg12[%c0_68, %c0_69] : memref<1x64xf32, #tpu.memory_space<vmem>>, vector<1x64xf32>
      %147 = vector.broadcast %146 : vector<1x64xf32> to vector<16x64xf32>
      %148 = arith.addf %145, %147 : vector<16x64xf32>
      %149 = arith.addf %32, %148 : vector<16x64xf32>
      %c0_70 = arith.constant 0 : index
      %c0_71 = arith.constant 0 : index
      %150 = vector.load %arg18[%c0_70, %c0_71] : memref<16x64xf32, #tpu.memory_space<vmem>>, vector<16x64xf32>
      tpu.vector_store %arg18[%c0_70, %c0_71], %149 {strides = array<i32>} : memref<16x64xf32, #tpu.memory_space<vmem>>, vector<16x64xf32>,
      %cst_72 = arith.constant dense<0.000000e+00> : vector<16xf32>
      %151 = vector.multi_reduction <add>, %149, %cst_72 [1] : vector<16x64xf32> to vector<16xf32>
      %152 = vector.shape_cast %151 : vector<16xf32> to vector<16x1xf32>
      %cst_73 = arith.constant 6.400000e+01 : f32
      %153 = vector.broadcast %cst_73 : f32 to vector<16x1xf32>
      %154 = arith.divf %152, %153 : vector<16x1xf32>
      %155 = vector.broadcast %154 : vector<16x1xf32> to vector<16x64xf32>
      %156 = arith.subf %149, %155 : vector<16x64xf32>
      %157 = arith.mulf %156, %156 : vector<16x64xf32>
      %cst_74 = arith.constant dense<0.000000e+00> : vector<16xf32>
      %158 = vector.multi_reduction <add>, %157, %cst_74 [1] : vector<16x64xf32> to vector<16xf32>
      %159 = vector.shape_cast %158 : vector<16xf32> to vector<16x1xf32>
      %cst_75 = arith.constant 6.400000e+01 : f32
      %160 = vector.broadcast %cst_75 : f32 to vector<16x1xf32>
      %161 = arith.divf %159, %160 : vector<16x1xf32>
      %162 = vector.broadcast %154 : vector<16x1xf32> to vector<16x64xf32>
      %163 = arith.subf %149, %162 : vector<16x64xf32>
      %cst_76 = arith.constant 9.99999997E-7 : f32
      %164 = vector.broadcast %cst_76 : f32 to vector<16x1xf32>
      %165 = arith.addf %161, %164 : vector<16x1xf32>
      %166 = math.rsqrt %165 : vector<16x1xf32>
      %167 = vector.broadcast %166 : vector<16x1xf32> to vector<16x64xf32>
      %168 = arith.mulf %163, %167 : vector<16x64xf32>
      %169 = arith.truncf %168 : vector<16x64xf32> to vector<16x64xbf16>
      %c0_77 = arith.constant 0 : index
      %c0_78 = arith.constant 0 : index
      %170 = vector.load %arg19[%c0_77, %c0_78] : memref<16x64xbf16, #tpu.memory_space<vmem>>, vector<16x64xbf16>
      tpu.vector_store %arg19[%c0_77, %c0_78], %169 {strides = array<i32>} : memref<16x64xbf16, #tpu.memory_space<vmem>>, vector<16x64xbf16>,
      %cst_79 = arith.constant 0.000000e+00 : f32
      %171 = vector.broadcast %cst_79 : f32 to vector<16x64xf32>
      %c0_80 = arith.constant 0 : index
      %c0_81 = arith.constant 0 : index
      %172 = vector.load %arg20[%c0_80, %c0_81] : memref<16x64xf32, #tpu.memory_space<vmem>>, vector<16x64xf32>
      tpu.vector_store %arg20[%c0_80, %c0_81], %171 {strides = array<i32>} : memref<16x64xf32, #tpu.memory_space<vmem>>, vector<16x64xf32>,
    } else {
    }
    %c0 = arith.constant 0 : index
    %c0_1 = arith.constant 0 : index
    %3 = vector.load %arg19[%c0, %c0_1] : memref<16x64xbf16, #tpu.memory_space<vmem>>, vector<16x64xbf16>
    %c0_2 = arith.constant 0 : index
    %c0_3 = arith.constant 0 : index
    %4 = vector.load %arg13[%c0_2, %c0_3] : memref<64x256xbf16, #tpu.memory_space<vmem>>, vector<64x256xbf16>
    %cst = arith.constant dense<0.000000e+00> : vector<16x256xf32>
    %5 = tpu.matmul %3, %4, %cst {dimension_numbers = #tpu.dot_dimension_numbers<[1], [0], [0], [1], [0, 0, 1, 1], [], []>} : vector<16x64xbf16>, vector<64x256xbf16>, vector<16x256xf32> -> vector<16x256xf32>
    %c0_4 = arith.constant 0 : index
    %c0_5 = arith.constant 0 : index
    %6 = vector.load %arg14[%c0_4, %c0_5] : memref<1x256xf32, #tpu.memory_space<vmem>>, vector<1x256xf32>
    %7 = vector.broadcast %6 : vector<1x256xf32> to vector<16x256xf32>
    %8 = arith.addf %5, %7 : vector<16x256xf32>
    %cst_6 = arith.constant 5.000000e-01 : f32
    %9 = vector.broadcast %cst_6 : f32 to vector<16x256xf32>
    %10 = arith.mulf %9, %8 : vector<16x256xf32>
    %cst_7 = arith.constant 4.471500e-02 : f32
    %11 = vector.broadcast %cst_7 : f32 to vector<16x256xf32>
    %12 = arith.mulf %11, %8 : vector<16x256xf32>
    %13 = arith.mulf %12, %8 : vector<16x256xf32>
    %14 = arith.mulf %13, %8 : vector<16x256xf32>
    %15 = arith.addf %8, %14 : vector<16x256xf32>
    %cst_8 = arith.constant 0.797884583 : f32
    %16 = vector.broadcast %cst_8 : f32 to vector<16x256xf32>
    %17 = arith.mulf %16, %15 : vector<16x256xf32>
    %18 = math.tanh %17 : vector<16x256xf32>
    %cst_9 = arith.constant 1.000000e+00 : f32
    %19 = vector.broadcast %cst_9 : f32 to vector<16x256xf32>
    %20 = arith.addf %19, %18 : vector<16x256xf32>
    %21 = arith.mulf %10, %20 : vector<16x256xf32>
    %c0_10 = arith.constant 0 : index
    %c0_11 = arith.constant 0 : index
    %22 = vector.load %arg20[%c0_10, %c0_11] : memref<16x64xf32, #tpu.memory_space<vmem>>, vector<16x64xf32>
    %23 = arith.truncf %21 : vector<16x256xf32> to vector<16x256xbf16>
    %c0_12 = arith.constant 0 : index
    %c0_13 = arith.constant 0 : index
    %24 = vector.load %arg15[%c0_12, %c0_13] : memref<256x64xbf16, #tpu.memory_space<vmem>>, vector<256x64xbf16>
    %cst_14 = arith.constant dense<0.000000e+00> : vector<16x64xf32>
    %25 = tpu.matmul %23, %24, %cst_14 {dimension_numbers = #tpu.dot_dimension_numbers<[1], [0], [0], [1], [0, 0, 1, 1], [], []>} : vector<16x256xbf16>, vector<256x64xbf16>, vector<16x64xf32> -> vector<16x64xf32>
    %26 = arith.addf %22, %25 : vector<16x64xf32>
    %c0_15 = arith.constant 0 : index
    %c0_16 = arith.constant 0 : index
    %27 = vector.load %arg20[%c0_15, %c0_16] : memref<16x64xf32, #tpu.memory_space<vmem>>, vector<16x64xf32>
    tpu.vector_store %arg20[%c0_15, %c0_16], %26 {strides = array<i32>} : memref<16x64xf32, #tpu.memory_space<vmem>>, vector<16x64xf32>,
    %c0_i32_17 = arith.constant 0 : i32
    %28 = arith.cmpi eq, %arg1, %c0_i32_17 : i32
    %29 = arith.extui %28 : i1 to i32
    %c0_i32_18 = arith.constant 0 : i32
    %30 = arith.cmpi ne, %29, %c0_i32_18 : i32
    scf.if %30 {
      %c0_19 = arith.constant 0 : index
      %c0_20 = arith.constant 0 : index
      %31 = vector.load %arg18[%c0_19, %c0_20] : memref<16x64xf32, #tpu.memory_space<vmem>>, vector<16x64xf32>
      %c0_21 = arith.constant 0 : index
      %c0_22 = arith.constant 0 : index
      %32 = vector.load %arg20[%c0_21, %c0_22] : memref<16x64xf32, #tpu.memory_space<vmem>>, vector<16x64xf32>
      %33 = arith.addf %31, %32 : vector<16x64xf32>
      %c0_23 = arith.constant 0 : index
      %c0_24 = arith.constant 0 : index
      %34 = vector.load %arg16[%c0_23, %c0_24] : memref<1x64xf32, #tpu.memory_space<vmem>>, vector<1x64xf32>
      %35 = vector.broadcast %34 : vector<1x64xf32> to vector<16x64xf32>
      %36 = arith.addf %33, %35 : vector<16x64xf32>
      %c0_25 = arith.constant 0 : index
      %c0_26 = arith.constant 0 : index
      %c0_27 = arith.constant 0 : index
      %37 = vector.load %arg17[%c0_25, %c0_26, %c0_27] : memref<1x16x64xf32, #tpu.memory_space<vmem>>, vector<1x16x64xf32>
      %38 = vector.shape_cast %37 : vector<1x16x64xf32> to vector<16x64xf32>
      %39 = vector.shape_cast %36 : vector<16x64xf32> to vector<1x16x64xf32>
      tpu.vector_store %arg17[%c0_25, %c0_26, %c0_27], %39 {strides = array<i32>} : memref<1x16x64xf32, #tpu.memory_space<vmem>>, vector<1x16x64xf32>,
    } else {
    }
    return
  }
  func.func @transform_0(%arg0: i32, %arg1: i32) -> (i32, i32, i32) {
    %c0_i32 = arith.constant 0 : i32
    %c0_i32_0 = arith.constant 0 : i32
    %c0_i32_1 = arith.constant 0 : i32
    return %arg0, %c0_i32, %c0_i32_0 : i32, i32, i32
  }
  func.func @transform_1(%arg0: i32, %arg1: i32) -> (i32, i32, i32) {
    %c0_i32 = arith.constant 0 : i32
    %c0_i32_0 = arith.constant 0 : i32
    %c0_i32_1 = arith.constant 0 : i32
    return %arg0, %c0_i32, %c0_i32_0 : i32, i32, i32
  }
  func.func @transform_2(%arg0: i32, %arg1: i32) -> (i32, i32, i32) {
    %c0_i32 = arith.constant 0 : i32
    %c0_i32_0 = arith.constant 0 : i32
    %c0_i32_1 = arith.constant 0 : i32
    return %arg0, %c0_i32, %c0_i32_0 : i32, i32, i32
  }
  func.func @transform_3(%arg0: i32, %arg1: i32) -> (i32, i32) {
    %c0_i32 = arith.constant 0 : i32
    %c0_i32_0 = arith.constant 0 : i32
    %c0_i32_1 = arith.constant 0 : i32
    return %c0_i32, %c0_i32_0 : i32, i32
  }
  func.func @transform_4(%arg0: i32, %arg1: i32) -> (i32, i32) {
    %c0_i32 = arith.constant 0 : i32
    %c0_i32_0 = arith.constant 0 : i32
    %c0_i32_1 = arith.constant 0 : i32
    return %c0_i32, %c0_i32_0 : i32, i32
  }
  func.func @transform_5(%arg0: i32, %arg1: i32) -> (i32, i32) {
    %c0_i32 = arith.constant 0 : i32
    %c0_i32_0 = arith.constant 0 : i32
    %c0_i32_1 = arith.constant 0 : i32
    return %c0_i32, %c0_i32_0 : i32, i32
  }
  func.func @transform_6(%arg0: i32, %arg1: i32) -> (i32, i32) {
    %c0_i32 = arith.constant 0 : i32
    %c0_i32_0 = arith.constant 0 : i32
    %c0_i32_1 = arith.constant 0 : i32
    return %c0_i32, %c0_i32_0 : i32, i32
  }
  func.func @transform_7(%arg0: i32, %arg1: i32) -> (i32, i32) {
    %c0_i32 = arith.constant 0 : i32
    %c0_i32_0 = arith.constant 0 : i32
    %c0_i32_1 = arith.constant 0 : i32
    return %c0_i32, %c0_i32_0 : i32, i32
  }
  func.func @transform_8(%arg0: i32, %arg1: i32) -> (i32, i32) {
    %c0_i32 = arith.constant 0 : i32
    %c0_i32_0 = arith.constant 0 : i32
    %c0_i32_1 = arith.constant 0 : i32
    return %c0_i32, %c0_i32_0 : i32, i32
  }
  func.func @transform_9(%arg0: i32, %arg1: i32) -> (i32, i32) {
    %c0_i32 = arith.constant 0 : i32
    %c0_i32_0 = arith.constant 0 : i32
    %c0_i32_1 = arith.constant 0 : i32
    return %c0_i32, %c0_i32_0 : i32, i32
  }
  func.func @transform_10(%arg0: i32, %arg1: i32) -> (i32, i32) {
    %c0_i32 = arith.constant 0 : i32
    %c0_i32_0 = arith.constant 0 : i32
    %c0_i32_1 = arith.constant 0 : i32
    return %c0_i32, %c0_i32_0 : i32, i32
  }
  func.func @transform_11(%arg0: i32, %arg1: i32) -> (i32, i32) {
    %c0_i32 = arith.constant 0 : i32
    %c0_i32_0 = arith.constant 0 : i32
    return %c0_i32, %arg1 : i32, i32
  }
  func.func @transform_12(%arg0: i32, %arg1: i32) -> (i32, i32) {
    %c0_i32 = arith.constant 0 : i32
    %c0_i32_0 = arith.constant 0 : i32
    return %c0_i32, %arg1 : i32, i32
  }
  func.func @transform_13(%arg0: i32, %arg1: i32) -> (i32, i32) {
    %c0_i32 = arith.constant 0 : i32
    %c0_i32_0 = arith.constant 0 : i32
    return %arg1, %c0_i32 : i32, i32
  }
  func.func @transform_14(%arg0: i32, %arg1: i32) -> (i32, i32) {
    %c0_i32 = arith.constant 0 : i32
    %c0_i32_0 = arith.constant 0 : i32
    %c0_i32_1 = arith.constant 0 : i32
    return %c0_i32, %c0_i32_0 : i32, i32
  }
  func.func @transform_15(%arg0: i32, %arg1: i32) -> (i32, i32, i32) {
    %c0_i32 = arith.constant 0 : i32
    %c0_i32_0 = arith.constant 0 : i32
    %c0_i32_1 = arith.constant 0 : i32
    return %arg0, %c0_i32, %c0_i32_0 : i32, i32, i32
  }
}

</mosaic_0001>

<llo_original>
// kernel: tpu_custom_call.1
$region0: #{tpu_custom_call.1}
  #allocation0 [shape = 'u32[]', space=smem, size = 0x4, offset = 0x4, fixed_abs, tag = 'smem constant byte address 0x4 - core index']
  #allocation1 [shape = 'u32[72,128]{1,0:T(1,128)}', space=vmem, size = 0x9000, scoped, tag = 'internal scratch']
  #allocation2 [shape = 'f32[16,64]{1,0:T(8,128)}', space=vmem, size = 0x2000, scoped, tag = 'scratch operand']
  #allocation3 [shape = 'bf16[16,64]{1,0:T(8,128)(2,1)}', space=vmem, size = 0x1000, scoped, tag = 'scratch operand']
  #allocation4 [shape = 'f32[16,64]{1,0:T(8,128)}', space=vmem, size = 0x2000, scoped, tag = 'scratch operand']
  %s0 = inlined_call_operand.vmem [shape: f32[2,16,64], index: 0, kind: input, shape index: {}]
  %s1 = inlined_call_operand.vmem [shape: f32[2,8,64], index: 1, kind: input, shape index: {}]
  %s2 = inlined_call_operand.vmem [shape: f32[2,16,1], index: 2, kind: input, shape index: {}]
  %s3 = inlined_call_operand.vmem [shape: f32[1,64], index: 3, kind: input, shape index: {}]
  %s4 = inlined_call_operand.vmem [shape: f32[1,64], index: 4, kind: input, shape index: {}]
  %s5 = inlined_call_operand.vmem [shape: bf16[64,64], index: 5, kind: input, shape index: {}]
  %s6 = inlined_call_operand.vmem [shape: f32[1,64], index: 6, kind: input, shape index: {}]
  %s7 = inlined_call_operand.vmem [shape: bf16[64,128], index: 7, kind: input, shape index: {}]
  %s8 = inlined_call_operand.vmem [shape: f32[1,128], index: 8, kind: input, shape index: {}]
  %s9 = inlined_call_operand.vmem [shape: bf16[64,64], index: 9, kind: input, shape index: {}]
  %s10 = inlined_call_operand.vmem [shape: f32[1,64], index: 10, kind: input, shape index: {}]
  %s11 = inlined_call_operand.vmem [shape: bf16[64,256], index: 11, kind: input, shape index: {}]
  %s12 = inlined_call_operand.vmem [shape: f32[1,256], index: 12, kind: input, shape index: {}]
  %s13 = inlined_call_operand.vmem [shape: bf16[256,64], index: 13, kind: input, shape index: {}]
  %s14 = inlined_call_operand.vmem [shape: f32[1,64], index: 14, kind: input, shape index: {}]
  %s15 = inlined_call_operand.hbm [shape: f32[2,16,64], index: 15, kind: output, shape index: {}]
  %s16 = sld [smem:[#allocation0]]
  $region101: #{tpu_custom_call.1} parent=0
    _
  %s18 = ssub.s32 1, %s16
  %s19 = scalar_select 0, %s18, %s16
  $region1: #{tpu_custom_call.1} parent=0
    #allocation5 [shape = 'u8[16384]{0}', space=vmem, size = 0x4000, scoped, tag = 'output window, operand 0']
    #allocation6 [shape = 's32[2]{0}', space=sflag, size = 0x8, scoped, tag = 'scoped memory for tpu_custom_call.1']
    %20 = vsyncpa [#allocation6], 0
    %s21 = scalar_lea.sflag [#allocation6], 1
    %22 = vsyncpa %s21, 0
    loop: start=0, step=1, limit=4
    $region2: #{tpu_custom_call.1} parent=1 // loop_pre_header
      _
    $region3: #{tpu_custom_call.1} parent=1 // loop_header
      %s24 = sphi 0, %s28
      %p25 = scmp.ge.s32.totalorder %s24, 4
      %s31 = sphi 0, %s43
      %s32 = sphi 0, %s39
      %s33 = sphi 0, %s31
      %s34 = sphi 0, %s32
      %s35 = sphi 0, %s33
      %s36 = sphi 0, %s34
      %s46 = sphi 0, %s48
      %s49 = sphi 0, %s46
      %s50 = sphi 0, %s49
      %s66 = sphi 0, %s50
      %s72 = sphi 0, %s74
      %s75 = sphi 0, %s72
      %s76 = sphi 0, %s75
      %s92 = sphi 0, %s76
      %s98 = sphi 0, %s100
      %s101 = sphi 0, %s98
      %s102 = sphi 0, %s101
      %s118 = sphi 0, %s102
      %s122 = sphi 0, %s122
      %s124 = sphi 0, %s122
      %s125 = sphi 0, %s124
      %s139 = sphi 0, %s125
      %s143 = sphi 0, %s143
      %s145 = sphi 0, %s143
      %s146 = sphi 0, %s145
      %s160 = sphi 0, %s146
      %s164 = sphi 0, %s164
      %s166 = sphi 0, %s164
      %s167 = sphi 0, %s166
      %s181 = sphi 0, %s167
      %s185 = sphi 0, %s185
      %s187 = sphi 0, %s185
      %s188 = sphi 0, %s187
      %s202 = sphi 0, %s188
      %s206 = sphi 0, %s206
      %s208 = sphi 0, %s206
      %s209 = sphi 0, %s208
      %s223 = sphi 0, %s209
      %s227 = sphi 0, %s227
      %s229 = sphi 0, %s227
      %s230 = sphi 0, %s229
      %s244 = sphi 0, %s230
      %s248 = sphi 0, %s248
      %s250 = sphi 0, %s248
      %s251 = sphi 0, %s250
      %s265 = sphi 0, %s251
      %s269 = sphi 0, %s269
      %s271 = sphi 0, %s269
      %s272 = sphi 0, %s271
      %s286 = sphi 0, %s272
      %s292 = sphi 0, %s294
      %s295 = sphi 0, %s292
      %s296 = sphi 0, %s295
      %s312 = sphi 0, %s296
      %s318 = sphi 0, %s320
      %s321 = sphi 0, %s318
      %s322 = sphi 0, %s321
      %s338 = sphi 0, %s322
      %s344 = sphi 0, %s346
      %s347 = sphi 0, %s344
      %s348 = sphi 0, %s347
      %s364 = sphi 0, %s348
      %s368 = sphi 0, %s368
      %s370 = sphi 0, %s368
      %s371 = sphi 0, %s370
      %s385 = sphi 0, %s371
      %s391 = sphi 0, %s393
      %s394 = sphi 0, %s391
      %s395 = sphi 0, %s394
      %s411 = sphi 0, %s395
    $region4: #{tpu_custom_call.1} parent=1 // loop_header_branch
      %27 = sbr.rel (%p25) target = $region8
    $region5: #{tpu_custom_call.1} parent=1 // loop_body
      %s29 = ssub.s32 %s24, 1
      %s30 = ssub.s32 %s24, 2
      %s37 = sadd.s32 1, %s32
      %p38 = scmp.ge.s32.totalorder %s37, 1
      %s39 = scalar_select %p38, 0, %s37
      %s40 = sadd.s32 1, %s31
      %s41 = scalar_select %p38, %s40, %s31
      %p42 = scmp.ge.s32.totalorder %s41, 2
      %s43 = scalar_select %p42, 0, %s41
      %s44 = ssub.s32 %s31, %s43
      %p45 = scmp.eq.s32.totalorder %s44, 0
      %s47 = sadd.s32 %s46, 1
      %s48 = scalar_select %p45, %s46, %s47
      %p51 = pneg %p45
      %p52 = scmp.eq.s32.totalorder %s24, 1
      %p53 = por %p51, %p52
      %p54 = scmp.ne.s32.totalorder %s46, %s49
      %p55 = scmp.eq.s32.totalorder %s24, 0
      %p56 = por %p54, %p55
      %p57 = scmp.ne.s32.totalorder %s46, %s49
      %p58 = scmp.eq.s32.totalorder %s29, 1
      %p59 = por %p57, %p58
      %p60 = scmp.ne.s32.totalorder %s49, %s50
      %p61 = scmp.eq.s32.totalorder %s29, 0
      %p62 = por %p60, %p61
      %p63 = scmp.ne.s32.totalorder %s49, %s50
      %p64 = scmp.eq.s32.totalorder %s30, 1
      %p65 = por %p63, %p64
      %p67 = scmp.ne.s32.totalorder %s50, %s66
      %p68 = scmp.eq.s32.totalorder %s30, 0
      %p69 = por %p67, %p68
      %s70 = ssub.s32 %s31, %s43
      %p71 = scmp.eq.s32.totalorder %s70, 0
      %s73 = sadd.s32 %s72, 1
      %s74 = scalar_select %p71, %s72, %s73
      %p77 = pneg %p71
      %p78 = scmp.eq.s32.totalorder %s24, 1
      %p79 = por %p77, %p78
      %p80 = scmp.ne.s32.totalorder %s72, %s75
      %p81 = scmp.eq.s32.totalorder %s24, 0
      %p82 = por %p80, %p81
      %p83 = scmp.ne.s32.totalorder %s72, %s75
      %p84 = scmp.eq.s32.totalorder %s29, 1
      %p85 = por %p83, %p84
      %p86 = scmp.ne.s32.totalorder %s75, %s76
      %p87 = scmp.eq.s32.totalorder %s29, 0
      %p88 = por %p86, %p87
      %p89 = scmp.ne.s32.totalorder %s75, %s76
      %p90 = scmp.eq.s32.totalorder %s30, 1
      %p91 = por %p89, %p90
      %p93 = scmp.ne.s32.totalorder %s76, %s92
      %p94 = scmp.eq.s32.totalorder %s30, 0
      %p95 = por %p93, %p94
      %s96 = ssub.s32 %s31, %s43
      %p97 = scmp.eq.s32.totalorder %s96, 0
      %s99 = sadd.s32 %s98, 1
      %s100 = scalar_select %p97, %s98, %s99
      %p103 = pneg %p97
      %p104 = scmp.eq.s32.totalorder %s24, 1
      %p105 = por %p103, %p104
      %p106 = scmp.ne.s32.totalorder %s98, %s101
      %p107 = scmp.eq.s32.totalorder %s24, 0
      %p108 = por %p106, %p107
      %p109 = scmp.ne.s32.totalorder %s98, %s101
      %p110 = scmp.eq.s32.totalorder %s29, 1
      %p111 = por %p109, %p110
      %p112 = scmp.ne.s32.totalorder %s101, %s102
      %p113 = scmp.eq.s32.totalorder %s29, 0
      %p114 = por %p112, %p113
      %p115 = scmp.ne.s32.totalorder %s101, %s102
      %p116 = scmp.eq.s32.totalorder %s30, 1
      %p117 = por %p115, %p116
      %p119 = scmp.ne.s32.totalorder %s102, %s118
      %p120 = scmp.eq.s32.totalorder %s30, 0
      %p121 = por %p119, %p120
      %s123 = sadd.s32 %s122, 1
      %p126 = scmp.eq.s32.totalorder %s24, 1
      %p127 = scmp.ne.s32.totalorder %s122, %s124
      %p128 = scmp.eq.s32.totalorder %s24, 0
      %p129 = por %p127, %p128
      %p130 = scmp.ne.s32.totalorder %s122, %s124
      %p131 = scmp.eq.s32.totalorder %s29, 1
      %p132 = por %p130, %p131
      %p133 = scmp.ne.s32.totalorder %s124, %s125
      %p134 = scmp.eq.s32.totalorder %s29, 0
      %p135 = por %p133, %p134
      %p136 = scmp.ne.s32.totalorder %s124, %s125
      %p137 = scmp.eq.s32.totalorder %s30, 1
      %p138 = por %p136, %p137
      %p140 = scmp.ne.s32.totalorder %s125, %s139
      %p141 = scmp.eq.s32.totalorder %s30, 0
      %p142 = por %p140, %p141
      %s144 = sadd.s32 %s143, 1
      %p147 = scmp.eq.s32.totalorder %s24, 1
      %p148 = scmp.ne.s32.totalorder %s143, %s145
      %p149 = scmp.eq.s32.totalorder %s24, 0
      %p150 = por %p148, %p149
      %p151 = scmp.ne.s32.totalorder %s143, %s145
      %p152 = scmp.eq.s32.totalorder %s29, 1
      %p153 = por %p151, %p152
      %p154 = scmp.ne.s32.totalorder %s145, %s146
      %p155 = scmp.eq.s32.totalorder %s29, 0
      %p156 = por %p154, %p155
      %p157 = scmp.ne.s32.totalorder %s145, %s146
      %p158 = scmp.eq.s32.totalorder %s30, 1
      %p159 = por %p157, %p158
      %p161 = scmp.ne.s32.totalorder %s146, %s160
      %p162 = scmp.eq.s32.totalorder %s30, 0
      %p163 = por %p161, %p162
      %s165 = sadd.s32 %s164, 1
      %p168 = scmp.eq.s32.totalorder %s24, 1
      %p169 = scmp.ne.s32.totalorder %s164, %s166
      %p170 = scmp.eq.s32.totalorder %s24, 0
      %p171 = por %p169, %p170
      %p172 = scmp.ne.s32.totalorder %s164, %s166
      %p173 = scmp.eq.s32.totalorder %s29, 1
      %p174 = por %p172, %p173
      %p175 = scmp.ne.s32.totalorder %s166, %s167
      %p176 = scmp.eq.s32.totalorder %s29, 0
      %p177 = por %p175, %p176
      %p178 = scmp.ne.s32.totalorder %s166, %s167
      %p179 = scmp.eq.s32.totalorder %s30, 1
      %p180 = por %p178, %p179
      %p182 = scmp.ne.s32.totalorder %s167, %s181
      %p183 = scmp.eq.s32.totalorder %s30, 0
      %p184 = por %p182, %p183
      %s186 = sadd.s32 %s185, 1
      %p189 = scmp.eq.s32.totalorder %s24, 1
      %p190 = scmp.ne.s32.totalorder %s185, %s187
      %p191 = scmp.eq.s32.totalorder %s24, 0
      %p192 = por %p190, %p191
      %p193 = scmp.ne.s32.totalorder %s185, %s187
      %p194 = scmp.eq.s32.totalorder %s29, 1
      %p195 = por %p193, %p194
      %p196 = scmp.ne.s32.totalorder %s187, %s188
      %p197 = scmp.eq.s32.totalorder %s29, 0
      %p198 = por %p196, %p197
      %p199 = scmp.ne.s32.totalorder %s187, %s188
      %p200 = scmp.eq.s32.totalorder %s30, 1
      %p201 = por %p199, %p200
      %p203 = scmp.ne.s32.totalorder %s188, %s202
      %p204 = scmp.eq.s32.totalorder %s30, 0
      %p205 = por %p203, %p204
      %s207 = sadd.s32 %s206, 1
      %p210 = scmp.eq.s32.totalorder %s24, 1
      %p211 = scmp.ne.s32.totalorder %s206, %s208
      %p212 = scmp.eq.s32.totalorder %s24, 0
      %p213 = por %p211, %p212
      %p214 = scmp.ne.s32.totalorder %s206, %s208
      %p215 = scmp.eq.s32.totalorder %s29, 1
      %p216 = por %p214, %p215
      %p217 = scmp.ne.s32.totalorder %s208, %s209
      %p218 = scmp.eq.s32.totalorder %s29, 0
      %p219 = por %p217, %p218
      %p220 = scmp.ne.s32.totalorder %s208, %s209
      %p221 = scmp.eq.s32.totalorder %s30, 1
      %p222 = por %p220, %p221
      %p224 = scmp.ne.s32.totalorder %s209, %s223
      %p225 = scmp.eq.s32.totalorder %s30, 0
      %p226 = por %p224, %p225
      %s228 = sadd.s32 %s227, 1
      %p231 = scmp.eq.s32.totalorder %s24, 1
      %p232 = scmp.ne.s32.totalorder %s227, %s229
      %p233 = scmp.eq.s32.totalorder %s24, 0
      %p234 = por %p232, %p233
      %p235 = scmp.ne.s32.totalorder %s227, %s229
      %p236 = scmp.eq.s32.totalorder %s29, 1
      %p237 = por %p235, %p236
      %p238 = scmp.ne.s32.totalorder %s229, %s230
      %p239 = scmp.eq.s32.totalorder %s29, 0
      %p240 = por %p238, %p239
      %p241 = scmp.ne.s32.totalorder %s229, %s230
      %p242 = scmp.eq.s32.totalorder %s30, 1
      %p243 = por %p241, %p242
      %p245 = scmp.ne.s32.totalorder %s230, %s244
      %p246 = scmp.eq.s32.totalorder %s30, 0
      %p247 = por %p245, %p246
      %s249 = sadd.s32 %s248, 1
      %p252 = scmp.eq.s32.totalorder %s24, 1
      %p253 = scmp.ne.s32.totalorder %s248, %s250
      %p254 = scmp.eq.s32.totalorder %s24, 0
      %p255 = por %p253, %p254
      %p256 = scmp.ne.s32.totalorder %s248, %s250
      %p257 = scmp.eq.s32.totalorder %s29, 1
      %p258 = por %p256, %p257
      %p259 = scmp.ne.s32.totalorder %s250, %s251
      %p260 = scmp.eq.s32.totalorder %s29, 0
      %p261 = por %p259, %p260
      %p262 = scmp.ne.s32.totalorder %s250, %s251
      %p263 = scmp.eq.s32.totalorder %s30, 1
      %p264 = por %p262, %p263
      %p266 = scmp.ne.s32.totalorder %s251, %s265
      %p267 = scmp.eq.s32.totalorder %s30, 0
      %p268 = por %p266, %p267
      %s270 = sadd.s32 %s269, 1
      %p273 = scmp.eq.s32.totalorder %s24, 1
      %p274 = scmp.ne.s32.totalorder %s269, %s271
      %p275 = scmp.eq.s32.totalorder %s24, 0
      %p276 = por %p274, %p275
      %p277 = scmp.ne.s32.totalorder %s269, %s271
      %p278 = scmp.eq.s32.totalorder %s29, 1
      %p279 = por %p277, %p278
      %p280 = scmp.ne.s32.totalorder %s271, %s272
      %p281 = scmp.eq.s32.totalorder %s29, 0
      %p282 = por %p280, %p281
      %p283 = scmp.ne.s32.totalorder %s271, %s272
      %p284 = scmp.eq.s32.totalorder %s30, 1
      %p285 = por %p283, %p284
      %p287 = scmp.ne.s32.totalorder %s272, %s286
      %p288 = scmp.eq.s32.totalorder %s30, 0
      %p289 = por %p287, %p288
      %s290 = ssub.s32 %s32, %s39
      %p291 = scmp.eq.s32.totalorder %s290, 0
      %s293 = sadd.s32 %s292, 1
      %s294 = scalar_select %p291, %s292, %s293
      %p297 = pneg %p291
      %p298 = scmp.eq.s32.totalorder %s24, 1
      %p299 = por %p297, %p298
      %p300 = scmp.ne.s32.totalorder %s292, %s295
      %p301 = scmp.eq.s32.totalorder %s24, 0
      %p302 = por %p300, %p301
      %p303 = scmp.ne.s32.totalorder %s292, %s295
      %p304 = scmp.eq.s32.totalorder %s29, 1
      %p305 = por %p303, %p304
      %p306 = scmp.ne.s32.totalorder %s295, %s296
      %p307 = scmp.eq.s32.totalorder %s29, 0
      %p308 = por %p306, %p307
      %p309 = scmp.ne.s32.totalorder %s295, %s296
      %p310 = scmp.eq.s32.totalorder %s30, 1
      %p311 = por %p309, %p310
      %p313 = scmp.ne.s32.totalorder %s296, %s312
      %p314 = scmp.eq.s32.totalorder %s30, 0
      %p315 = por %p313, %p314
      %s316 = ssub.s32 %s32, %s39
      %p317 = scmp.eq.s32.totalorder %s316, 0
      %s319 = sadd.s32 %s318, 1
      %s320 = scalar_select %p317, %s318, %s319
      %p323 = pneg %p317
      %p324 = scmp.eq.s32.totalorder %s24, 1
      %p325 = por %p323, %p324
      %p326 = scmp.ne.s32.totalorder %s318, %s321
      %p327 = scmp.eq.s32.totalorder %s24, 0
      %p328 = por %p326, %p327
      %p329 = scmp.ne.s32.totalorder %s318, %s321
      %p330 = scmp.eq.s32.totalorder %s29, 1
      %p331 = por %p329, %p330
      %p332 = scmp.ne.s32.totalorder %s321, %s322
      %p333 = scmp.eq.s32.totalorder %s29, 0
      %p334 = por %p332, %p333
      %p335 = scmp.ne.s32.totalorder %s321, %s322
      %p336 = scmp.eq.s32.totalorder %s30, 1
      %p337 = por %p335, %p336
      %p339 = scmp.ne.s32.totalorder %s322, %s338
      %p340 = scmp.eq.s32.totalorder %s30, 0
      %p341 = por %p339, %p340
      %s342 = ssub.s32 %s32, %s39
      %p343 = scmp.eq.s32.totalorder %s342, 0
      %s345 = sadd.s32 %s344, 1
      %s346 = scalar_select %p343, %s344, %s345
      %p349 = pneg %p343
      %p350 = scmp.eq.s32.totalorder %s24, 1
      %p351 = por %p349, %p350
      %p352 = scmp.ne.s32.totalorder %s344, %s347
      %p353 = scmp.eq.s32.totalorder %s24, 0
      %p354 = por %p352, %p353
      %p355 = scmp.ne.s32.totalorder %s344, %s347
      %p356 = scmp.eq.s32.totalorder %s29, 1
      %p357 = por %p355, %p356
      %p358 = scmp.ne.s32.totalorder %s347, %s348
      %p359 = scmp.eq.s32.totalorder %s29, 0
      %p360 = por %p358, %p359
      %p361 = scmp.ne.s32.totalorder %s347, %s348
      %p362 = scmp.eq.s32.totalorder %s30, 1
      %p363 = por %p361, %p362
      %p365 = scmp.ne.s32.totalorder %s348, %s364
      %p366 = scmp.eq.s32.totalorder %s30, 0
      %p367 = por %p365, %p366
      %s369 = sadd.s32 %s368, 1
      %p372 = scmp.eq.s32.totalorder %s24, 1
      %p373 = scmp.ne.s32.totalorder %s368, %s370
      %p374 = scmp.eq.s32.totalorder %s24, 0
      %p375 = por %p373, %p374
      %p376 = scmp.ne.s32.totalorder %s368, %s370
      %p377 = scmp.eq.s32.totalorder %s29, 1
      %p378 = por %p376, %p377
      %p379 = scmp.ne.s32.totalorder %s370, %s371
      %p380 = scmp.eq.s32.totalorder %s29, 0
      %p381 = por %p379, %p380
      %p382 = scmp.ne.s32.totalorder %s370, %s371
      %p383 = scmp.eq.s32.totalorder %s30, 1
      %p384 = por %p382, %p383
      %p386 = scmp.ne.s32.totalorder %s371, %s385
      %p387 = scmp.eq.s32.totalorder %s30, 0
      %p388 = por %p386, %p387
      %s389 = ssub.s32 %s31, %s43
      %p390 = scmp.eq.s32.totalorder %s389, 0
      %s392 = sadd.s32 %s391, 1
      %s393 = scalar_select %p390, %s391, %s392
      %p396 = pneg %p390
      %p397 = scmp.eq.s32.totalorder %s24, 1
      %p398 = por %p396, %p397
      %p399 = scmp.ne.s32.totalorder %s391, %s394
      %p400 = scmp.eq.s32.totalorder %s24, 0
      %p401 = por %p399, %p400
      %p402 = scmp.ne.s32.totalorder %s391, %s394
      %p403 = scmp.eq.s32.totalorder %s29, 1
      %p404 = por %p402, %p403
      %p405 = scmp.ne.s32.totalorder %s394, %s395
      %p406 = scmp.eq.s32.totalorder %s29, 0
      %p407 = por %p405, %p406
      %p408 = scmp.ne.s32.totalorder %s394, %s395
      %p409 = scmp.eq.s32.totalorder %s30, 1
      %p410 = por %p408, %p409
      %p412 = scmp.ne.s32.totalorder %s395, %s411
      %p413 = scmp.eq.s32.totalorder %s30, 0
      %p414 = por %p412, %p413
      %p415 = scmp.le.s32.totalorder 1, %s24
      %p416 = scmp.lt.s32.totalorder %s24, 3
      %p417 = pnand %p415, %p416
      %p418 = pneg %p417
      // Predicated region
      $region9: #{tpu_custom_call.1} parent=5 // pred_check
        _
      $region10: #{tpu_custom_call.1} parent=5 // pred_check_branch
        %420 = sbr.rel (%p417) target = $region12
      $region11: #{tpu_custom_call.1} parent=5 // pred_region
        %s421 = ssub.s32 %s24, 1
        // Predicated region
        $region13: #{tpu_custom_call.1} parent=11 // pred_check
          %p422 = pneg %p135
        $region14: #{tpu_custom_call.1} parent=11 // pred_check_branch
          %424 = sbr.rel (%p422) target = $region16
        $region15: #{tpu_custom_call.1} parent=11 // pred_region
          _
        $region16: #{tpu_custom_call.1} parent=11 // pred_fallthru
          _
        // Predicated region
        $region17: #{tpu_custom_call.1} parent=11 // pred_check
          %p425 = pneg %p156
        $region18: #{tpu_custom_call.1} parent=11 // pred_check_branch
          %427 = sbr.rel (%p425) target = $region20
        $region19: #{tpu_custom_call.1} parent=11 // pred_region
          _
        $region20: #{tpu_custom_call.1} parent=11 // pred_fallthru
          _
        // Predicated region
        $region21: #{tpu_custom_call.1} parent=11 // pred_check
          %p428 = pneg %p177
        $region22: #{tpu_custom_call.1} parent=11 // pred_check_branch
          %430 = sbr.rel (%p428) target = $region24
        $region23: #{tpu_custom_call.1} parent=11 // pred_region
          _
        $region24: #{tpu_custom_call.1} parent=11 // pred_fallthru
          _
        // Predicated region
        $region25: #{tpu_custom_call.1} parent=11 // pred_check
          %p431 = pneg %p198
        $region26: #{tpu_custom_call.1} parent=11 // pred_check_branch
          %433 = sbr.rel (%p431) target = $region28
        $region27: #{tpu_custom_call.1} parent=11 // pred_region
          _
        $region28: #{tpu_custom_call.1} parent=11 // pred_fallthru
          _
        // Predicated region
        $region29: #{tpu_custom_call.1} parent=11 // pred_check
          %p434 = pneg %p219
        $region30: #{tpu_custom_call.1} parent=11 // pred_check_branch
          %436 = sbr.rel (%p434) target = $region32
        $region31: #{tpu_custom_call.1} parent=11 // pred_region
          _
        $region32: #{tpu_custom_call.1} parent=11 // pred_fallthru
          _
        // Predicated region
        $region33: #{tpu_custom_call.1} parent=11 // pred_check
          %p437 = pneg %p240
        $region34: #{tpu_custom_call.1} parent=11 // pred_check_branch
          %439 = sbr.rel (%p437) target = $region36
        $region35: #{tpu_custom_call.1} parent=11 // pred_region
          _
        $region36: #{tpu_custom_call.1} parent=11 // pred_fallthru
          _
        // Predicated region
        $region37: #{tpu_custom_call.1} parent=11 // pred_check
          %p440 = pneg %p261
        $region38: #{tpu_custom_call.1} parent=11 // pred_check_branch
          %442 = sbr.rel (%p440) target = $region40
        $region39: #{tpu_custom_call.1} parent=11 // pred_region
          _
        $region40: #{tpu_custom_call.1} parent=11 // pred_fallthru
          _
        // Predicated region
        $region41: #{tpu_custom_call.1} parent=11 // pred_check
          %p443 = pneg %p282
        $region42: #{tpu_custom_call.1} parent=11 // pred_check_branch
          %445 = sbr.rel (%p443) target = $region44
        $region43: #{tpu_custom_call.1} parent=11 // pred_region
          _
        $region44: #{tpu_custom_call.1} parent=11 // pred_fallthru
          _
        // Predicated region
        $region45: #{tpu_custom_call.1} parent=11 // pred_check
          %p446 = pneg %p308
        $region46: #{tpu_custom_call.1} parent=11 // pred_check_branch
          %448 = sbr.rel (%p446) target = $region48
        $region47: #{tpu_custom_call.1} parent=11 // pred_region
          %s449 = smul.u32 2, %s34
          %p450 = scmp.lt.s32.totalorder %s449, 1
          %s451 = scalar_select %p450, %s449, 1
          %s452 = smul.addr %s451, 4
          %s453 = scalar_lea.vmem %s11, %s452
          %s454 = smul.u32 2, %s34
        $region48: #{tpu_custom_call.1} parent=11 // pred_fallthru
          _
        // Predicated region
        $region49: #{tpu_custom_call.1} parent=11 // pred_check
          %p455 = pneg %p334
        $region50: #{tpu_custom_call.1} parent=11 // pred_check_branch
          %457 = sbr.rel (%p455) target = $region52
        $region51: #{tpu_custom_call.1} parent=11 // pred_region
          %s458 = smul.u32 2, %s34
          %p459 = scmp.lt.s32.totalorder %s458, 1
          %s460 = scalar_select %p459, %s458, 1
          %s461 = scalar_lea.vmem %s12, %s460
          %s462 = smul.u32 2, %s34
        $region52: #{tpu_custom_call.1} parent=11 // pred_fallthru
          _
        // Predicated region
        $region53: #{tpu_custom_call.1} parent=11 // pred_check
          %p463 = pneg %p360
        $region54: #{tpu_custom_call.1} parent=11 // pred_check_branch
          %465 = sbr.rel (%p463) target = $region56
        $region55: #{tpu_custom_call.1} parent=11 // pred_region
          %s466 = smul.u32 32, %s34
          %p467 = scmp.lt.s32.totalorder %s466, 31
          %s468 = scalar_select %p467, %s466, 31
          %s469 = smul.addr %s468, 4
          %s470 = scalar_lea.vmem %s13, %s469
          %s471 = smul.u32 32, %s34
        $region56: #{tpu_custom_call.1} parent=11 // pred_fallthru
          _
        // Predicated region
        $region57: #{tpu_custom_call.1} parent=11 // pred_check
          %p472 = pneg %p381
        $region58: #{tpu_custom_call.1} parent=11 // pred_check_branch
          %474 = sbr.rel (%p472) target = $region60
        $region59: #{tpu_custom_call.1} parent=11 // pred_region
          _
        $region60: #{tpu_custom_call.1} parent=11 // pred_fallthru
          _
      $region12: #{tpu_custom_call.1} parent=5 // pred_fallthru
        _
      %p475 = scmp.lt.s32.totalorder %s24, 2
      // Predicated region
      $region61: #{tpu_custom_call.1} parent=5 // pred_check
        %p476 = pneg %p475
      $region62: #{tpu_custom_call.1} parent=5 // pred_check_branch
        %478 = sbr.rel (%p476) target = $region64
      $region63: #{tpu_custom_call.1} parent=5 // pred_region
        // Predicated region
        $region65: #{tpu_custom_call.1} parent=63 // pred_check
          %p479 = pneg %p56
        $region66: #{tpu_custom_call.1} parent=63 // pred_check_branch
          %481 = sbr.rel (%p479) target = $region68
        $region67: #{tpu_custom_call.1} parent=63 // pred_region
          %p482 = scmp.lt.s32.totalorder %s31, 1
          %s483 = scalar_select %p482, %s31, 1
          %s484 = smul.addr %s483, 2
          %s485 = smul.addr %s484, 8
          %s486 = scalar_lea.vmem %s0, %s485
        $region68: #{tpu_custom_call.1} parent=63 // pred_fallthru
          _
        // Predicated region
        $region69: #{tpu_custom_call.1} parent=63 // pred_check
          %p487 = pneg %p82
        $region70: #{tpu_custom_call.1} parent=63 // pred_check_branch
          %489 = sbr.rel (%p487) target = $region72
        $region71: #{tpu_custom_call.1} parent=63 // pred_region
          %p490 = scmp.lt.s32.totalorder %s31, 1
          %s491 = scalar_select %p490, %s31, 1
          %s492 = smul.addr %s491, 8
          %s493 = scalar_lea.vmem %s1, %s492
        $region72: #{tpu_custom_call.1} parent=63 // pred_fallthru
          _
        // Predicated region
        $region73: #{tpu_custom_call.1} parent=63 // pred_check
          %p494 = pneg %p108
        $region74: #{tpu_custom_call.1} parent=63 // pred_check_branch
          %496 = sbr.rel (%p494) target = $region76
        $region75: #{tpu_custom_call.1} parent=63 // pred_region
          %p497 = scmp.lt.s32.totalorder %s31, 1
          %s498 = scalar_select %p497, %s31, 1
          %s499 = smul.addr %s498, 2
          %s500 = smul.addr %s499, 8
          %s501 = scalar_lea.vmem %s2, %s500
        $region76: #{tpu_custom_call.1} parent=63 // pred_fallthru
          _
      $region64: #{tpu_custom_call.1} parent=5 // pred_fallthru
        _
      %p502 = scmp.le.s32.totalorder 1, %s24
      %p503 = scmp.lt.s32.totalorder %s24, 3
      %p504 = pnand %p502, %p503
      %p505 = pneg %p504
      // Predicated region
      $region77: #{tpu_custom_call.1} parent=5 // pred_check
        _
      $region78: #{tpu_custom_call.1} parent=5 // pred_check_branch
        %507 = sbr.rel (%p504) target = $region80
      $region79: #{tpu_custom_call.1} parent=5 // pred_region
        %s508 = ssub.s32 %s24, 1
        %p509 = scmp.lt.s32.totalorder %s33, 1
        %s510 = scalar_select %p509, %s33, 1
        %s511 = smul.addr %s510, 2
        %s512 = smul.addr %s511, 8
        %s513 = scalar_lea.vmem %s0, %s512
        %p514 = pneg %p62
        %p515 = pneg %p59
        %p516 = scmp.lt.s32.totalorder %s33, 1
        %s517 = scalar_select %p516, %s33, 1
        %s518 = smul.addr %s517, 8
        %s519 = scalar_lea.vmem %s1, %s518
        %p520 = pneg %p88
        %p521 = pneg %p85
        %p522 = scmp.lt.s32.totalorder %s33, 1
        %s523 = scalar_select %p522, %s33, 1
        %s524 = smul.addr %s523, 2
        %s525 = smul.addr %s524, 8
        %s526 = scalar_lea.vmem %s2, %s525
        %p527 = pneg %p114
        %p528 = pneg %p111
        %p529 = pneg %p135
        %p530 = pneg %p132
        %p531 = pneg %p156
        %p532 = pneg %p153
        %p533 = pneg %p177
        %p534 = pneg %p174
        %p535 = pneg %p198
        %p536 = pneg %p195
        %p537 = pneg %p219
        %p538 = pneg %p216
        %p539 = pneg %p240
        %p540 = pneg %p237
        %p541 = pneg %p261
        %p542 = pneg %p258
        %p543 = pneg %p282
        %p544 = pneg %p279
        %s545 = smul.u32 2, %s34
        %p546 = scmp.lt.s32.totalorder %s545, 1
        %s547 = scalar_select %p546, %s545, 1
        %s548 = smul.addr %s547, 4
        %s549 = scalar_lea.vmem %s11, %s548
        %p550 = pneg %p308
        %p551 = pneg %p305
        %s552 = smul.u32 2, %s34
        %p553 = scmp.lt.s32.totalorder %s552, 1
        %s554 = scalar_select %p553, %s552, 1
        %s555 = scalar_lea.vmem %s12, %s554
        %p556 = pneg %p334
        %p557 = pneg %p331
        %s558 = smul.u32 32, %s34
        %p559 = scmp.lt.s32.totalorder %s558, 31
        %s560 = scalar_select %p559, %s558, 31
        %s561 = smul.addr %s560, 4
        %s562 = scalar_lea.vmem %s13, %s561
        %p563 = pneg %p360
        %p564 = pneg %p357
        %p565 = pneg %p381
        %p566 = pneg %p378
        %p567 = pneg %p407
        %p568 = pneg %p404
        %s569 = sand.u32 %s394, 1
        %s570 = scalar_lea.sflag [#allocation6], %s569
        %s571 = sand.u32 %s394, 1
        %s572 = smul.addr %s571, 16
        %s573 = scalar_lea.vmem [#allocation5], %s572
        %p574 = scmp.lt.s32.totalorder %s33, 1
        %s575 = scalar_select %p574, %s33, 1
        %s576 = smul.addr %s575, 2
        %s577 = smul.addr %s576, 8
        %s578 = scalar_lea.vmem %s0, %s577
        %p579 = scmp.lt.s32.totalorder %s33, 1
        %s580 = scalar_select %p579, %s33, 1
        %s581 = smul.addr %s580, 8
        %s582 = scalar_lea.vmem %s1, %s581
        %p583 = scmp.lt.s32.totalorder %s33, 1
        %s584 = scalar_select %p583, %s33, 1
        %s585 = smul.addr %s584, 2
        %s586 = smul.addr %s585, 8
        %s587 = scalar_lea.vmem %s2, %s586
        %s588 = smul.u32 2, %s34
        %p589 = scmp.lt.s32.totalorder %s588, 1
        %s590 = scalar_select %p589, %s588, 1
        %s591 = smul.addr %s590, 4
        %s592 = scalar_lea.vmem %s11, %s591
        %s593 = smul.u32 2, %s34
        %s594 = smul.u32 2, %s34
        %p595 = scmp.lt.s32.totalorder %s594, 1
        %s596 = scalar_select %p595, %s594, 1
        %s597 = scalar_lea.vmem %s12, %s596
        %s598 = smul.u32 2, %s34
        %s599 = smul.u32 32, %s34
        %p600 = scmp.lt.s32.totalorder %s599, 31
        %s601 = scalar_select %p600, %s599, 31
        %s602 = smul.addr %s601, 4
        %s603 = scalar_lea.vmem %s13, %s602
        %s604 = smul.u32 32, %s34
        %p606 = scmp.eq.s32.totalorder %s34, 0
        // Predicated region
        $region81: #{tpu_custom_call.1} parent=79 // pred_check
          %p607 = pneg %p606
        $region82: #{tpu_custom_call.1} parent=79 // pred_check_branch
          %609 = sbr.rel (%p607) target = $region84
        $region83: #{tpu_custom_call.1} parent=79 // pred_region
          %v610 = vld [vmem:[%s578] sm:$0xff]
          %v611 = vld [vmem:[%s578 + $0x8] sm:$0xff]
          %v612 = vld [vmem:[%s582] sm:$0xff]
          %v613 = vld [vmem:[%s587] sm:$0xff]
          %v614 = vld [vmem:[%s587 + $0x8] sm:$0xff]
          %vm615 = vcmask 523264
          %v616 = vsel %vm615, %v610, 0.0
          %617 = vadd.xlane.f32.xlu0 %v616
          %v618 = vpop.xlane.xlu0 %617
          %v619 = vsel %vm615, %v611, 0.0
          %620 = vadd.xlane.f32.xlu0 %v619
          %v621 = vpop.xlane.xlu0 %620
          %v622 = vrcp.pop 64.0
          %v623 = vmul.f32 64.0, %v622
          %v624 = vsub.f32 1.0, %v623
          %v625 = vmul.f32 %v622, %v624
          %v626 = vadd.f32 %v622, %v625
          %vm627 = vweird.f32 %v622
          %v628 = vsel %vm627, %v622, %v626
          %v629 = vmul.f32 %v618, %v628
          %v630 = vmul.f32 %v621, %v628
          %v631 = vsub.f32 %v610, %v629
          %v632 = vsub.f32 %v611, %v630
          %v633 = vmul.f32 %v631, %v631
          %v634 = vmul.f32 %v632, %v632
          %v635 = vsel %vm615, %v633, 0.0
          %636 = vadd.xlane.f32.xlu0 %v635
          %v637 = vpop.xlane.xlu0 %636
          %v638 = vsel %vm615, %v634, 0.0
          %639 = vadd.xlane.f32.xlu0 %v638
          %v640 = vpop.xlane.xlu0 %639
          %v641 = vmul.f32 %v637, %v628
          %v642 = vmul.f32 %v640, %v628
          %v643 = vadd.f32 %v641, 1e-06
          %v644 = vadd.f32 %v642, 1e-06
          %v645 = vrsqrt.pop %v643
          %v646 = vmul.f32 %v645, %v643
          %v647 = vmul.f32 %v646, %v645
          %v648 = vmul.f32 0.5, %v647
          %v649 = vsub.f32 1.5, %v648
          %v650 = vmul.f32 %v645, %v649
          %vm651 = vweird.f32 %v643
          %vm652 = vweird.f32 %v645
          %vm653 = vmor %vm651, %vm652
          %v654 = vsel %vm653, %v645, %v650
          %v655 = vrsqrt.pop %v644
          %v656 = vmul.f32 %v655, %v644
          %v657 = vmul.f32 %v656, %v655
          %v658 = vmul.f32 0.5, %v657
          %v659 = vsub.f32 1.5, %v658
          %v660 = vmul.f32 %v655, %v659
          %vm661 = vweird.f32 %v644
          %vm662 = vweird.f32 %v655
          %vm663 = vmor %vm661, %vm662
          %v664 = vsel %vm663, %v655, %v660
          %v665 = vmul.f32 %v631, %v654
          %v666 = vmul.f32 %v632, %v664
          %v667 = vpack.c.bf16 %v666, %v665
          %v668 = vld [vmem:[%s3] sm:$0x1]
          %v669 = vld [vmem:[%s4] sm:$0x1]
          %v670 = vsel %vm615, %v612, 0.0
          %671 = vadd.xlane.f32.xlu0 %v670
          %v672 = vpop.xlane.xlu0 %671
          %v673 = vmul.f32 %v672, %v628
          %v674 = vsub.f32 %v612, %v673
          %v675 = vmul.f32 %v674, %v674
          %v676 = vsel %vm615, %v675, 0.0
          %677 = vadd.xlane.f32.xlu0 %v676
          %v678 = vpop.xlane.xlu0 %677
          %v679 = vmul.f32 %v678, %v628
          %v680 = vadd.f32 %v679, 1e-05
          %v681 = vrsqrt.pop %v680
          %v682 = vmul.f32 %v681, %v680
          %v683 = vmul.f32 %v682, %v681
          %v684 = vmul.f32 0.5, %v683
          %v685 = vsub.f32 1.5, %v684
          %v686 = vmul.f32 %v681, %v685
          %vm687 = vweird.f32 %v680
          %vm688 = vweird.f32 %v681
          %vm689 = vmor %vm687, %vm688
          %v690 = vsel %vm689, %v681, %v686
          %v691 = vmul.f32 %v674, %v690
          %v693 = vperm.slane %v668, 0
          %v695 = vmul.f32 %v691, %v693
          %v697 = vperm.slane %v669, 0
          %v699 = vadd.f32 %v695, %v697
          %v700 = vpack.c.bf16 %v699, %v699
          %v701 = vld [vmem:[%s5] sm:$0xf]
          %v702 = vld [vmem:[%s5 + $0x4] sm:$0xf]
          %v703 = vld [vmem:[%s5 + $0x8] sm:$0xf]
          %v704 = vld [vmem:[%s5 + $0xc] sm:$0xf]
          %v705 = vld [vmem:[%s5 + $0x10] sm:$0xf]
          %v706 = vld [vmem:[%s5 + $0x14] sm:$0xf]
          %v707 = vld [vmem:[%s5 + $0x18] sm:$0xf]
          %v708 = vld [vmem:[%s5 + $0x1c] sm:$0xf]
          %v709 = vld [vmem:[%s6] sm:$0x1]
          %v711 = vperm.slane %v709, 0
          %v721 = vunpack.c.l.b16 %v701
          %v722 = vunpack.c.l.b16 %v702
          %v723 = vunpack.c.l.b16 %v703
          %v724 = vunpack.c.l.b16 %v704
          %v725 = vunpack.c.l.b16 %v705
          %v726 = vunpack.c.l.b16 %v706
          %v727 = vunpack.c.l.b16 %v707
          %v728 = vunpack.c.l.b16 %v708
          %v729 = vpack.c.b16 %v722, %v721
          %v730 = vpack.c.b16 %v724, %v723
          %v731 = vpack.c.b16 %v726, %v725
          %v732 = vpack.c.b16 %v728, %v727
          %v738 = vsel %vm615, %v667, 0
          %740 = vmatpush.bf16.msra.mxu0 0
          %741 = vmatpush.bf16.msra.mxu0 0
          %742 = vmatpush.bf16.msra.mxu0 0
          %743 = vmatpush.bf16.msra.mxu0 0
          %744 = vmatpush.bf16.msra.mxu0 %v732
          %745 = vmatpush.bf16.msra.mxu0 %v731
          %746 = vmatpush.bf16.msra.mxu0 %v730
          %747 = vmatpush.bf16.msra.mxu0 %v729
          %748 = vmatmul.bf16.gmra.mxu0 %v738
          %v749 = vpop.f32.mrf.mxu0
          %v750 = vadd.f32 %v711, %v749
          %v751 = vpop.f32.mrf.mxu0
          %v752 = vadd.f32 %v711, %v751
          %753 = vdwg.mxu0
          %v754 = vld [vmem:[%s7] sm:$0xf]
          %v755 = vld [vmem:[%s7 + $0x4] sm:$0xf]
          %v756 = vld [vmem:[%s7 + $0x8] sm:$0xf]
          %v757 = vld [vmem:[%s7 + $0xc] sm:$0xf]
          %v758 = vld [vmem:[%s7 + $0x10] sm:$0xf]
          %v759 = vld [vmem:[%s7 + $0x14] sm:$0xf]
          %v760 = vld [vmem:[%s7 + $0x18] sm:$0xf]
          %v761 = vld [vmem:[%s7 + $0x1c] sm:$0xf]
          %v762 = vld [vmem:[%s8] sm:$0x1]
          %v764 = vperm.slane %v762, 0
          %v774 = vunpack.c.l.b16 %v754
          %v775 = vunpack.c.l.b16 %v755
          %v776 = vunpack.c.l.b16 %v756
          %v777 = vunpack.c.l.b16 %v757
          %v778 = vunpack.c.l.b16 %v758
          %v779 = vunpack.c.l.b16 %v759
          %v780 = vunpack.c.l.b16 %v760
          %v781 = vunpack.c.l.b16 %v761
          %v782 = vpack.c.b16 %v775, %v774
          %v783 = vpack.c.b16 %v777, %v776
          %v784 = vpack.c.b16 %v779, %v778
          %v785 = vpack.c.b16 %v781, %v780
          %v791 = vsel %vm615, %v700, 0
          %793 = vmatpush.bf16.msra.mxu0 0
          %794 = vmatpush.bf16.msra.mxu0 0
          %795 = vmatpush.bf16.msra.mxu0 0
          %796 = vmatpush.bf16.msra.mxu0 0
          %797 = vmatpush.bf16.msra.mxu0 %v785
          %798 = vmatpush.bf16.msra.mxu0 %v784
          %799 = vmatpush.bf16.msra.mxu0 %v783
          %800 = vmatpush.bf16.msra.mxu0 %v782
          %801 = vmatmul.bf16.gmra.mxu0 %v791
          %v802 = vpop.f32.mrf.mxu0
          %v803 = vadd.f32 %v764, %v802
          %v804 = vpop.f32.mrf.mxu0
          %805 = vdwg.mxu0
          %v806 = vpack.c.bf16 %v750, %v750
          %v807 = vpack.c.bf16 %v752, %v752
          %v808 = vpack.c.bf16 %v803, %v803
          %v809 = vld [vmem:[%s9] sm:$0xf]
          %v810 = vld [vmem:[%s9 + $0x4] sm:$0xf]
          %v811 = vld [vmem:[%s9 + $0x8] sm:$0xf]
          %v812 = vld [vmem:[%s9 + $0xc] sm:$0xf]
          %v813 = vld [vmem:[%s9 + $0x10] sm:$0xf]
          %v814 = vld [vmem:[%s9 + $0x14] sm:$0xf]
          %v815 = vld [vmem:[%s9 + $0x18] sm:$0xf]
          %v816 = vld [vmem:[%s9 + $0x1c] sm:$0xf]
          %vm817 = vcmp.gt.f32.partialorder %v613, 0.0
          %vm818 = vcmp.gt.f32.partialorder %v614, 0.0
          %v819 = vsel %vm817, 0.0, -3.4028235e+38
          %v820 = vsel %vm818, 0.0, -3.4028235e+38
          %v823 = vunpack.c.l.b16 %v806
          %v824 = vunpack.c.l.b16 %v807
          %v825 = vpack.c.b16 %v824, %v823
          %vm826 = vcmask 261120
          %v828 = vsel %vm826, %v825, 0
          %v831 = vsel %vm826, %v808, 0
          %833 = vmatpush.bf16.xpose.msra.mxu0 0
          %834 = vmatpush.bf16.xpose.msra.mxu0 0
          %835 = vmatpush.bf16.xpose.msra.mxu0 0
          %836 = vmatpush.bf16.xpose.msra.mxu0 0
          %837 = vmatpush.bf16.xpose.msra.mxu0 0
          %838 = vmatpush.bf16.xpose.msra.mxu0 0
          %839 = vmatpush.bf16.xpose.msra.mxu0 0
          %840 = vmatpush.bf16.xpose.msra.mxu0 %v831
          %841 = vmatmul.bf16.gmra.mxu0 %v828
          %v842 = vpop.f32.mrf.mxu0
          %v843 = vadd.f32 0.0, %v842
          %v844 = vpop.f32.mrf.mxu0
          %v845 = vadd.f32 0.0, %v844
          %846 = vdwg.mxu0
          %v847 = vmul.f32 %v843, 0.17677669
          %v848 = vmul.f32 %v845, 0.17677669
          %850 = vset.pattern.permute.xlu0 0
          %851 = vperm.xlu0 %850, %v819
          %v852 = vpop.permute.xlu0 %851
          %855 = vset.pattern.permute.xlu0 0
          %856 = vperm.xlu0 %855, %v820
          %v857 = vpop.permute.xlu0 %856
          %v859 = vadd.f32 %v847, %v852
          %v860 = vadd.f32 %v848, %v857
          %vm861 = vcmask 64512
          %v862 = vsel %vm861, %v859, -inf
          %863 = vmax.xlane.f32.xlu0 %v862
          %v864 = vpop.xlane.xlu0 %863
          %v865 = vsel %vm861, %v860, -inf
          %866 = vmax.xlane.f32.xlu0 %v865
          %v867 = vpop.xlane.xlu0 %866
          %v868 = vsub.f32 %v859, %v864
          %v869 = vsub.f32 %v860, %v867
          %v870 = vmul.f32 %v868, 1.442695
          %v871 = vpow.pop %v870
          %v872 = vmul.f32 %v869, 1.442695
          %v873 = vpow.pop %v872
          %v874 = vsel %vm861, %v871, 0.0
          %875 = vadd.xlane.f32.xlu0 %v874
          %v876 = vpop.xlane.xlu0 %875
          %v877 = vsel %vm861, %v873, 0.0
          %878 = vadd.xlane.f32.xlu0 %v877
          %v879 = vpop.xlane.xlu0 %878
          %v880 = vpack.c.bf16 %v873, %v871
          %v882 = vunpack.c.l.b16 %v808
          %v883 = vpack.c.b16 %v882, %v882
          %884 = vrot.lane.b32.xlu0 %v883, 64
          %v885 = vpop.permute.xlu0 %884
          %v887 = vsel %vm861, %v880, 0
          %vm889 = vcmask 1043456
          %v891 = vsel %vm889, %v885, 0
          %893 = vmatpush.bf16.msra.mxu0 0
          %894 = vmatpush.bf16.msra.mxu0 0
          %895 = vmatpush.bf16.msra.mxu0 0
          %896 = vmatpush.bf16.msra.mxu0 0
          %897 = vmatpush.bf16.msra.mxu0 0
          %898 = vmatpush.bf16.msra.mxu0 0
          %899 = vmatpush.bf16.msra.mxu0 0
          %900 = vmatpush.bf16.msra.mxu0 %v891
          %901 = vmatmul.bf16.gmra.mxu0 %v887
          %v902 = vpop.f32.mrf.mxu0
          %v903 = vadd.f32 0.0, %v902
          %v904 = vpop.f32.mrf.mxu0
          %v905 = vadd.f32 0.0, %v904
          %906 = vdwg.mxu0
          %v907 = vrcp.pop %v876
          %v908 = vrcp.pop %v879
          %v909 = vmul.f32 %v903, %v907
          %v910 = vmul.f32 %v905, %v908
          %v911 = vpack.c.bf16 %v909, %v909
          %v912 = vpack.c.bf16 %v910, %v910
          %913 = vrot.lane.b32.xlu0 %v825, 96
          %v914 = vpop.permute.xlu0 %913
          %915 = vrot.lane.b32.xlu0 %v883, 96
          %v916 = vpop.permute.xlu0 %915
          %v918 = vsel %vm826, %v914, 0
          %v921 = vsel %vm826, %v916, 0
          %923 = vmatpush.bf16.xpose.msra.mxu0 0
          %924 = vmatpush.bf16.xpose.msra.mxu0 0
          %925 = vmatpush.bf16.xpose.msra.mxu0 0
          %926 = vmatpush.bf16.xpose.msra.mxu0 0
          %927 = vmatpush.bf16.xpose.msra.mxu0 0
          %928 = vmatpush.bf16.xpose.msra.mxu0 0
          %929 = vmatpush.bf16.xpose.msra.mxu0 0
          %930 = vmatpush.bf16.xpose.msra.mxu0 %v921
          %931 = vmatmul.bf16.gmra.mxu0 %v918
          %v932 = vpop.f32.mrf.mxu0
          %v933 = vadd.f32 0.0, %v932
          %v934 = vpop.f32.mrf.mxu0
          %v935 = vadd.f32 0.0, %v934
          %936 = vdwg.mxu0
          %v937 = vmul.f32 %v933, 0.17677669
          %v938 = vmul.f32 %v935, 0.17677669
          %v939 = vadd.f32 %v937, %v852
          %v940 = vadd.f32 %v938, %v857
          %v941 = vsel %vm861, %v939, -inf
          %942 = vmax.xlane.f32.xlu0 %v941
          %v943 = vpop.xlane.xlu0 %942
          %v944 = vsel %vm861, %v940, -inf
          %945 = vmax.xlane.f32.xlu0 %v944
          %v946 = vpop.xlane.xlu0 %945
          %v947 = vsub.f32 %v939, %v943
          %v948 = vsub.f32 %v940, %v946
          %v949 = vmul.f32 %v947, 1.442695
          %v950 = vpow.pop %v949
          %v951 = vmul.f32 %v948, 1.442695
          %v952 = vpow.pop %v951
          %v953 = vsel %vm861, %v950, 0.0
          %954 = vadd.xlane.f32.xlu0 %v953
          %v955 = vpop.xlane.xlu0 %954
          %v956 = vsel %vm861, %v952, 0.0
          %957 = vadd.xlane.f32.xlu0 %v956
          %v958 = vpop.xlane.xlu0 %957
          %v959 = vpack.c.bf16 %v952, %v950
          %960 = vrot.lane.b32.xlu0 %v883, 32
          %v961 = vpop.permute.xlu0 %960
          %v963 = vsel %vm861, %v959, 0
          %v966 = vsel %vm889, %v961, 0
          %968 = vmatpush.bf16.msra.mxu0 0
          %969 = vmatpush.bf16.msra.mxu0 0
          %970 = vmatpush.bf16.msra.mxu0 0
          %971 = vmatpush.bf16.msra.mxu0 0
          %972 = vmatpush.bf16.msra.mxu0 0
          %973 = vmatpush.bf16.msra.mxu0 0
          %974 = vmatpush.bf16.msra.mxu0 0
          %975 = vmatpush.bf16.msra.mxu0 %v966
          %976 = vmatmul.bf16.gmra.mxu0 %v963
          %v977 = vpop.f32.mrf.mxu0
          %v978 = vadd.f32 0.0, %v977
          %v979 = vpop.f32.mrf.mxu0
          %v980 = vadd.f32 0.0, %v979
          %981 = vdwg.mxu0
          %v982 = vrcp.pop %v955
          %v983 = vrcp.pop %v958
          %v984 = vmul.f32 %v978, %v982
          %v985 = vmul.f32 %v980, %v983
          %v986 = vpack.c.bf16 %v984, %v984
          %v987 = vpack.c.bf16 %v985, %v985
          %v990 = vunpack.c.l.b16 %v911
          %v991 = vunpack.c.l.b16 %v912
          %v992 = vpack.c.b16 %v991, %v990
          %v995 = vunpack.c.l.b16 %v986
          %v996 = vunpack.c.l.b16 %v987
          %v997 = vpack.c.b16 %v996, %v995
          %998 = vrot.lane.b32.xlu0 %v997, 32
          %v999 = vpop.permute.xlu0 %998
          %v1002 = vsel %vm826, %v992, %v999
          %v1003 = vld [vmem:[%s10] sm:$0x1]
          %v1005 = vperm.slane %v1003, 0
          %v1015 = vunpack.c.l.b16 %v809
          %v1016 = vunpack.c.l.b16 %v810
          %v1017 = vunpack.c.l.b16 %v811
          %v1018 = vunpack.c.l.b16 %v812
          %v1019 = vunpack.c.l.b16 %v813
          %v1020 = vunpack.c.l.b16 %v814
          %v1021 = vunpack.c.l.b16 %v815
          %v1022 = vunpack.c.l.b16 %v816
          %v1023 = vpack.c.b16 %v1016, %v1015
          %v1024 = vpack.c.b16 %v1018, %v1017
          %v1025 = vpack.c.b16 %v1020, %v1019
          %v1026 = vpack.c.b16 %v1022, %v1021
          %v1031 = vsel %vm615, %v1002, 0
          %1033 = vmatpush.bf16.msra.mxu0 0
          %1034 = vmatpush.bf16.msra.mxu0 0
          %1035 = vmatpush.bf16.msra.mxu0 0
          %1036 = vmatpush.bf16.msra.mxu0 0
          %1037 = vmatpush.bf16.msra.mxu0 %v1026
          %1038 = vmatpush.bf16.msra.mxu0 %v1025
          %1039 = vmatpush.bf16.msra.mxu0 %v1024
          %1040 = vmatpush.bf16.msra.mxu0 %v1023
          %1041 = vmatmul.bf16.gmra.mxu0 %v1031
          %v1042 = vpop.f32.mrf.mxu0
          %v1043 = vadd.f32 %v1005, %v1042
          %v1044 = vpop.f32.mrf.mxu0
          %v1045 = vadd.f32 %v1005, %v1044
          %1046 = vdwg.mxu0
          %v1047 = vadd.f32 %v610, %v1043
          %v1048 = vadd.f32 %v611, %v1045
          %1049 = vst.msk [vmem:[#allocation2] sm:$0xff] %vm615, %v1047
          %1050 = vst.msk [vmem:[#allocation2 + $0x8] sm:$0xff] %vm615, %v1048
          %v1051 = vsel %vm615, %v1047, 0.0
          %1052 = vadd.xlane.f32.xlu0 %v1051
          %v1053 = vpop.xlane.xlu0 %1052
          %v1054 = vsel %vm615, %v1048, 0.0
          %1055 = vadd.xlane.f32.xlu0 %v1054
          %v1056 = vpop.xlane.xlu0 %1055
          %v1057 = vmul.f32 %v1053, %v628
          %v1058 = vmul.f32 %v1056, %v628
          %v1059 = vsub.f32 %v1047, %v1057
          %v1060 = vsub.f32 %v1048, %v1058
          %v1061 = vmul.f32 %v1059, %v1059
          %v1062 = vmul.f32 %v1060, %v1060
          %v1063 = vsel %vm615, %v1061, 0.0
          %1064 = vadd.xlane.f32.xlu0 %v1063
          %v1065 = vpop.xlane.xlu0 %1064
          %v1066 = vsel %vm615, %v1062, 0.0
          %1067 = vadd.xlane.f32.xlu0 %v1066
          %v1068 = vpop.xlane.xlu0 %1067
          %v1069 = vmul.f32 %v1065, %v628
          %v1070 = vmul.f32 %v1068, %v628
          %v1071 = vadd.f32 %v1069, 1e-06
          %v1072 = vadd.f32 %v1070, 1e-06
          %v1073 = vrsqrt.pop %v1071
          %v1074 = vmul.f32 %v1073, %v1071
          %v1075 = vmul.f32 %v1074, %v1073
          %v1076 = vmul.f32 0.5, %v1075
          %v1077 = vsub.f32 1.5, %v1076
          %v1078 = vmul.f32 %v1073, %v1077
          %vm1079 = vweird.f32 %v1071
          %vm1080 = vweird.f32 %v1073
          %vm1081 = vmor %vm1079, %vm1080
          %v1082 = vsel %vm1081, %v1073, %v1078
          %v1083 = vrsqrt.pop %v1072
          %v1084 = vmul.f32 %v1083, %v1072
          %v1085 = vmul.f32 %v1084, %v1083
          %v1086 = vmul.f32 0.5, %v1085
          %v1087 = vsub.f32 1.5, %v1086
          %v1088 = vmul.f32 %v1083, %v1087
          %vm1089 = vweird.f32 %v1072
          %vm1090 = vweird.f32 %v1083
          %vm1091 = vmor %vm1089, %vm1090
          %v1092 = vsel %vm1091, %v1083, %v1088
          %v1093 = vmul.f32 %v1059, %v1082
          %v1094 = vmul.f32 %v1060, %v1092
          %v1095 = vpack.c.bf16 %v1093, %v1093
          %v1096 = vpack.c.bf16 %v1094, %v1094
          %vm1097 = vcmask 519168
          %1098 = vst.msk [vmem:[#allocation3] sm:$0xf] %vm1097, %v1095
          %1099 = vst.msk [vmem:[#allocation3 + $0x4] sm:$0xf] %vm1097, %v1096
          %1100 = vst.msk [vmem:[#allocation4] sm:$0xff] %vm615, 0.0
          %1101 = vst.msk [vmem:[#allocation4 + $0x8] sm:$0xff] %vm615, 0.0
        $region84: #{tpu_custom_call.1} parent=79 // pred_fallthru
          _
        %v1102 = vld [vmem:[#allocation3] sm:$0xf]
        %v1103 = vld [vmem:[#allocation3 + $0x4] sm:$0xf]
        %v1104 = vld [vmem:[%s592] sm:$0xff]
        %v1105 = vld [vmem:[%s592 + $0x8] sm:$0xff]
        %v1106 = vld [vmem:[%s592 + $0x10] sm:$0xff]
        %v1107 = vld [vmem:[%s592 + $0x18] sm:$0xff]
        %v1108 = vld [vmem:[%s592 + $0x20] sm:$0xff]
        %v1109 = vld [vmem:[%s592 + $0x28] sm:$0xff]
        %v1110 = vld [vmem:[%s592 + $0x30] sm:$0xff]
        %v1111 = vld [vmem:[%s592 + $0x38] sm:$0xff]
        %v1112 = vld [vmem:[%s597] sm:$0x3]
        %v1114 = vperm.slane %v1112, 0
        %v1115 = vperm.slane %v1112, 1
        %v1120 = vunpack.c.l.b16 %v1102
        %v1121 = vunpack.c.l.b16 %v1103
        %v1122 = vpack.c.b16 %v1121, %v1120
        %v1131 = vunpack.c.l.b16 %v1104
        %v1132 = vunpack.c.h.b16 %v1104
        %v1133 = vunpack.c.l.b16 %v1105
        %v1134 = vunpack.c.h.b16 %v1105
        %v1135 = vunpack.c.l.b16 %v1106
        %v1136 = vunpack.c.h.b16 %v1106
        %v1137 = vunpack.c.l.b16 %v1107
        %v1138 = vunpack.c.h.b16 %v1107
        %v1139 = vunpack.c.l.b16 %v1108
        %v1140 = vunpack.c.h.b16 %v1108
        %v1141 = vunpack.c.l.b16 %v1109
        %v1142 = vunpack.c.h.b16 %v1109
        %v1143 = vunpack.c.l.b16 %v1110
        %v1144 = vunpack.c.h.b16 %v1110
        %v1145 = vunpack.c.l.b16 %v1111
        %v1146 = vunpack.c.h.b16 %v1111
        %v1147 = vpack.c.b16 %v1133, %v1131
        %v1148 = vpack.c.b16 %v1134, %v1132
        %v1149 = vpack.c.b16 %v1137, %v1135
        %v1150 = vpack.c.b16 %v1138, %v1136
        %v1151 = vpack.c.b16 %v1141, %v1139
        %v1152 = vpack.c.b16 %v1142, %v1140
        %v1153 = vpack.c.b16 %v1145, %v1143
        %v1154 = vpack.c.b16 %v1146, %v1144
        %vm1163 = vcmask 523264
        %v1165 = vsel %vm1163, %v1122, 0
        %1167 = vmatpush.bf16.msra.mxu0 0
        %1168 = vmatpush.bf16.msra.mxu0 0
        %1169 = vmatpush.bf16.msra.mxu0 0
        %1170 = vmatpush.bf16.msra.mxu0 0
        %1171 = vmatpush.bf16.msra.mxu0 %v1153
        %1172 = vmatpush.bf16.msra.mxu0 %v1151
        %1173 = vmatpush.bf16.msra.mxu0 %v1149
        %1174 = vmatpush.bf16.msra.mxu0 %v1147
        %1175 = vmatmul.bf16.gmra.mxu0 %v1165
        %v1176 = vpop.f32.mrf.mxu0
        %v1177 = vadd.f32 %v1114, %v1176
        %v1178 = vpop.f32.mrf.mxu0
        %v1179 = vadd.f32 %v1114, %v1178
        %1180 = vdwg.mxu0
        %1181 = vmatpush.bf16.msra.mxu0 0
        %1182 = vmatpush.bf16.msra.mxu0 0
        %1183 = vmatpush.bf16.msra.mxu0 0
        %1184 = vmatpush.bf16.msra.mxu0 0
        %1185 = vmatpush.bf16.msra.mxu0 %v1154
        %1186 = vmatpush.bf16.msra.mxu0 %v1152
        %1187 = vmatpush.bf16.msra.mxu0 %v1150
        %1188 = vmatpush.bf16.msra.mxu0 %v1148
        %1189 = vmatmul.bf16.gmra.mxu0 %v1165
        %v1190 = vpop.f32.mrf.mxu0
        %v1191 = vadd.f32 %v1115, %v1190
        %v1192 = vpop.f32.mrf.mxu0
        %v1193 = vadd.f32 %v1115, %v1192
        %1194 = vdwg.mxu0
        %v1195 = vmul.f32 %v1177, 0.5
        %v1196 = vmul.f32 %v1191, 0.5
        %v1197 = vmul.f32 %v1179, 0.5
        %v1198 = vmul.f32 %v1193, 0.5
        %v1199 = vmul.f32 %v1177, 0.044715
        %v1200 = vmul.f32 %v1191, 0.044715
        %v1201 = vmul.f32 %v1179, 0.044715
        %v1202 = vmul.f32 %v1193, 0.044715
        %v1203 = vmul.f32 %v1199, %v1177
        %v1204 = vmul.f32 %v1200, %v1191
        %v1205 = vmul.f32 %v1201, %v1179
        %v1206 = vmul.f32 %v1202, %v1193
        %v1207 = vmul.f32 %v1203, %v1177
        %v1208 = vmul.f32 %v1204, %v1191
        %v1209 = vmul.f32 %v1205, %v1179
        %v1210 = vmul.f32 %v1206, %v1193
        %v1211 = vadd.f32 %v1177, %v1207
        %v1212 = vadd.f32 %v1191, %v1208
        %v1213 = vadd.f32 %v1179, %v1209
        %v1214 = vadd.f32 %v1193, %v1210
        %v1215 = vmul.f32 %v1211, 0.7978846
        %v1216 = vmul.f32 %v1212, 0.7978846
        %v1217 = vmul.f32 %v1213, 0.7978846
        %v1218 = vmul.f32 %v1214, 0.7978846
        %v1219 = vtanh.pop %v1215
        %v1220 = vtanh.pop %v1216
        %v1221 = vtanh.pop %v1217
        %v1222 = vtanh.pop %v1218
        %v1223 = vadd.f32 %v1219, 1.0
        %v1224 = vadd.f32 %v1220, 1.0
        %v1225 = vadd.f32 %v1221, 1.0
        %v1226 = vadd.f32 %v1222, 1.0
        %v1227 = vmul.f32 %v1195, %v1223
        %v1228 = vmul.f32 %v1196, %v1224
        %v1229 = vmul.f32 %v1197, %v1225
        %v1230 = vmul.f32 %v1198, %v1226
        %v1231 = vld [vmem:[#allocation4] sm:$0xff]
        %v1232 = vld [vmem:[#allocation4 + $0x8] sm:$0xff]
        %v1233 = vpack.c.bf16 %v1229, %v1227
        %v1234 = vpack.c.bf16 %v1230, %v1228
        %v1235 = vld [vmem:[%s603] sm:$0xf]
        %v1236 = vld [vmem:[%s603 + $0x4] sm:$0xf]
        %v1237 = vld [vmem:[%s603 + $0x8] sm:$0xf]
        %v1238 = vld [vmem:[%s603 + $0xc] sm:$0xf]
        %v1239 = vld [vmem:[%s603 + $0x10] sm:$0xf]
        %v1240 = vld [vmem:[%s603 + $0x14] sm:$0xf]
        %v1241 = vld [vmem:[%s603 + $0x18] sm:$0xf]
        %v1242 = vld [vmem:[%s603 + $0x1c] sm:$0xf]
        %v1243 = vld [vmem:[%s603 + $0x20] sm:$0xf]
        %v1244 = vld [vmem:[%s603 + $0x24] sm:$0xf]
        %v1245 = vld [vmem:[%s603 + $0x28] sm:$0xf]
        %v1246 = vld [vmem:[%s603 + $0x2c] sm:$0xf]
        %v1247 = vld [vmem:[%s603 + $0x30] sm:$0xf]
        %v1248 = vld [vmem:[%s603 + $0x34] sm:$0xf]
        %v1249 = vld [vmem:[%s603 + $0x38] sm:$0xf]
        %v1250 = vld [vmem:[%s603 + $0x3c] sm:$0xf]
        %v1251 = vld [vmem:[%s603 + $0x40] sm:$0xf]
        %v1252 = vld [vmem:[%s603 + $0x44] sm:$0xf]
        %v1253 = vld [vmem:[%s603 + $0x48] sm:$0xf]
        %v1254 = vld [vmem:[%s603 + $0x4c] sm:$0xf]
        %v1255 = vld [vmem:[%s603 + $0x50] sm:$0xf]
        %v1256 = vld [vmem:[%s603 + $0x54] sm:$0xf]
        %v1257 = vld [vmem:[%s603 + $0x58] sm:$0xf]
        %v1258 = vld [vmem:[%s603 + $0x5c] sm:$0xf]
        %v1259 = vld [vmem:[%s603 + $0x60] sm:$0xf]
        %v1260 = vld [vmem:[%s603 + $0x64] sm:$0xf]
        %v1261 = vld [vmem:[%s603 + $0x68] sm:$0xf]
        %v1262 = vld [vmem:[%s603 + $0x6c] sm:$0xf]
        %v1263 = vld [vmem:[%s603 + $0x70] sm:$0xf]
        %v1264 = vld [vmem:[%s603 + $0x74] sm:$0xf]
        %v1265 = vld [vmem:[%s603 + $0x78] sm:$0xf]
        %v1266 = vld [vmem:[%s603 + $0x7c] sm:$0xf]
        %v1299 = vunpack.c.l.b16 %v1235
        %v1300 = vunpack.c.l.b16 %v1236
        %v1301 = vunpack.c.l.b16 %v1237
        %v1302 = vunpack.c.l.b16 %v1238
        %v1303 = vunpack.c.l.b16 %v1239
        %v1304 = vunpack.c.l.b16 %v1240
        %v1305 = vunpack.c.l.b16 %v1241
        %v1306 = vunpack.c.l.b16 %v1242
        %v1307 = vunpack.c.l.b16 %v1243
        %v1308 = vunpack.c.l.b16 %v1244
        %v1309 = vunpack.c.l.b16 %v1245
        %v1310 = vunpack.c.l.b16 %v1246
        %v1311 = vunpack.c.l.b16 %v1247
        %v1312 = vunpack.c.l.b16 %v1248
        %v1313 = vunpack.c.l.b16 %v1249
        %v1314 = vunpack.c.l.b16 %v1250
        %v1315 = vunpack.c.l.b16 %v1251
        %v1316 = vunpack.c.l.b16 %v1252
        %v1317 = vunpack.c.l.b16 %v1253
        %v1318 = vunpack.c.l.b16 %v1254
        %v1319 = vunpack.c.l.b16 %v1255
        %v1320 = vunpack.c.l.b16 %v1256
        %v1321 = vunpack.c.l.b16 %v1257
        %v1322 = vunpack.c.l.b16 %v1258
        %v1323 = vunpack.c.l.b16 %v1259
        %v1324 = vunpack.c.l.b16 %v1260
        %v1325 = vunpack.c.l.b16 %v1261
        %v1326 = vunpack.c.l.b16 %v1262
        %v1327 = vunpack.c.l.b16 %v1263
        %v1328 = vunpack.c.l.b16 %v1264
        %v1329 = vunpack.c.l.b16 %v1265
        %v1330 = vunpack.c.l.b16 %v1266
        %v1331 = vpack.c.b16 %v1300, %v1299
        %v1332 = vpack.c.b16 %v1302, %v1301
        %v1333 = vpack.c.b16 %v1304, %v1303
        %v1334 = vpack.c.b16 %v1306, %v1305
        %v1335 = vpack.c.b16 %v1308, %v1307
        %v1336 = vpack.c.b16 %v1310, %v1309
        %v1337 = vpack.c.b16 %v1312, %v1311
        %v1338 = vpack.c.b16 %v1314, %v1313
        %v1339 = vpack.c.b16 %v1316, %v1315
        %v1340 = vpack.c.b16 %v1318, %v1317
        %v1341 = vpack.c.b16 %v1320, %v1319
        %v1342 = vpack.c.b16 %v1322, %v1321
        %v1343 = vpack.c.b16 %v1324, %v1323
        %v1344 = vpack.c.b16 %v1326, %v1325
        %v1345 = vpack.c.b16 %v1328, %v1327
        %v1346 = vpack.c.b16 %v1330, %v1329
        %1363 = vmatpush.bf16.msra.mxu0 %v1338
        %1364 = vmatpush.bf16.msra.mxu0 %v1337
        %1365 = vmatpush.bf16.msra.mxu0 %v1336
        %1366 = vmatpush.bf16.msra.mxu0 %v1335
        %1367 = vmatpush.bf16.msra.mxu0 %v1334
        %1368 = vmatpush.bf16.msra.mxu0 %v1333
        %1369 = vmatpush.bf16.msra.mxu0 %v1332
        %1370 = vmatpush.bf16.msra.mxu0 %v1331
        %1371 = vmatmul.bf16.gmra.mxu0 %v1233
        %v1372 = vpop.f32.mrf.mxu0
        %v1373 = vadd.f32 0.0, %v1372
        %v1374 = vpop.f32.mrf.mxu0
        %v1375 = vadd.f32 0.0, %v1374
        %1376 = vdwg.mxu0
        %1377 = vmatpush.bf16.msra.mxu0 %v1346
        %1378 = vmatpush.bf16.msra.mxu0 %v1345
        %1379 = vmatpush.bf16.msra.mxu0 %v1344
        %1380 = vmatpush.bf16.msra.mxu0 %v1343
        %1381 = vmatpush.bf16.msra.mxu0 %v1342
        %1382 = vmatpush.bf16.msra.mxu0 %v1341
        %1383 = vmatpush.bf16.msra.mxu0 %v1340
        %1384 = vmatpush.bf16.msra.mxu0 %v1339
        %1385 = vmatmul.bf16.gmra.mxu0 %v1234
        %v1386 = vpop.f32.mrf.mxu0
        %v1387 = vadd.f32 %v1373, %v1386
        %v1388 = vpop.f32.mrf.mxu0
        %v1389 = vadd.f32 %v1375, %v1388
        %1390 = vdwg.mxu0
        %v1391 = vadd.f32 %v1231, %v1387
        %v1392 = vadd.f32 %v1232, %v1389
        %1393 = vst.msk [vmem:[#allocation4] sm:$0xff] %vm1163, %v1391
        %1394 = vst.msk [vmem:[#allocation4 + $0x8] sm:$0xff] %vm1163, %v1392
        // Predicated region
        $region85: #{tpu_custom_call.1} parent=79 // pred_check
          %p1395 = pneg %p606
        $region86: #{tpu_custom_call.1} parent=79 // pred_check_branch
          %1397 = sbr.rel (%p1395) target = $region88
        $region87: #{tpu_custom_call.1} parent=79 // pred_region
          %v1398 = vld [vmem:[#allocation2] sm:$0xff]
          %v1399 = vld [vmem:[#allocation2 + $0x8] sm:$0xff]
          %v1400 = vld [vmem:[#allocation4] sm:$0xff]
          %v1401 = vld [vmem:[#allocation4 + $0x8] sm:$0xff]
          %v1402 = vadd.f32 %v1398, %v1400
          %v1403 = vadd.f32 %v1399, %v1401
          %v1404 = vld [vmem:[%s14] sm:$0x1]
          %v1406 = vperm.slane %v1404, 0
          %v1408 = vadd.f32 %v1402, %v1406
          %v1409 = vadd.f32 %v1403, %v1406
          %1410 = vst.msk [vmem:[%s573] sm:$0xff] %vm1163, %v1408
          %1411 = vst.msk [vmem:[%s573 + $0x8] sm:$0xff] %vm1163, %v1409
        $region88: #{tpu_custom_call.1} parent=79 // pred_fallthru
          _
        %s1412 = sand.u32 %s394, 1
        %s1413 = scalar_lea.sflag [#allocation6], %s1412
        %s1414 = sand.u32 %s394, 1
        %s1415 = smul.addr %s1414, 16
        %s1416 = scalar_lea.vmem [#allocation5], %s1415
        // Predicated region
        $region89: #{tpu_custom_call.1} parent=79 // pred_check
          %p1417 = pneg %p404
        $region90: #{tpu_custom_call.1} parent=79 // pred_check_branch
          %1419 = sbr.rel (%p1417) target = $region92
        $region91: #{tpu_custom_call.1} parent=79 // pred_region
          %1421 = vsyncadd %s1413, 0
          %s1422 = smul.addr %s33, 2
          %s1423 = smul.addr %s1422, 8
          %s1424 = scalar_lea.hbm %s15, %s1423
          %s1425 = sshll.u32 %s1416, 4
          %s1426 = int_to_ptr.vmem [resolvable:$true] %s1425
          %s1427 = sshll.u32 %s1424, 4
          %s1428 = int_to_ptr.hbm [resolvable:$true] %s1427
          %1433 = dma.vmem_to_hbm [thread:$0]  %s1426, 256, %s1428, %s1413, 128, 128, 8
        $region92: #{tpu_custom_call.1} parent=79 // pred_fallthru
          _
      $region80: #{tpu_custom_call.1} parent=5 // pred_fallthru
        _
      %p1434 = scmp.le.s32.totalorder 2, %s24
      // Predicated region
      $region93: #{tpu_custom_call.1} parent=5 // pred_check
        %p1435 = pneg %p1434
      $region94: #{tpu_custom_call.1} parent=5 // pred_check_branch
        %1437 = sbr.rel (%p1435) target = $region96
      $region95: #{tpu_custom_call.1} parent=5 // pred_region
        %s1438 = ssub.s32 %s24, 2
        // Predicated region
        $region97: #{tpu_custom_call.1} parent=95 // pred_check
          %p1439 = pneg %p410
        $region98: #{tpu_custom_call.1} parent=95 // pred_check_branch
          %1441 = sbr.rel (%p1439) target = $region100
        $region99: #{tpu_custom_call.1} parent=95 // pred_region
          %s1442 = sand.u32 %s395, 1
          %s1443 = scalar_lea.sflag [#allocation6], %s1442
          %s1444 = sand.u32 %s395, 1
          %s1445 = smul.addr %s1444, 16
          %s1446 = scalar_lea.vmem [#allocation5], %s1445
          %1448 = dma.done %s1443, 256
        $region100: #{tpu_custom_call.1} parent=95 // pred_fallthru
          _
      $region96: #{tpu_custom_call.1} parent=5 // pred_fallthru
        _
    $region6: #{tpu_custom_call.1} parent=1 // loop_footer
      %s28 = sadd.s32 1, %s24
    $region7: #{tpu_custom_call.1} parent=1 // loop_footer_branch
      %23 = sbr.rel target = $region3
    $region8: #{tpu_custom_call.1} parent=1 // loop_exit
      _
    %1449 = vsyncpa [#allocation6], 1
    %s1450 = scalar_lea.sflag [#allocation6], 1
    %1451 = vsyncpa %s1450, 1

</llo_original>
